<compile_context>
chip_gen: v5e
topology: v5e:2x2
jax: 0.10.0
libtpu: 0.0.40
codegen_flags: <defaults>
</compile_context>

<pallas_src>
import jax
import jax.numpy as jnp
from jax.experimental import pallas as pl
from jax.experimental.pallas import tpu as pltpu

# Small, deterministic stand-in for RNN_CONFIG.
CONFIG = dict(
    use_AE=True,
    AE_vocab_size=50,
    emb_dim=16,
    hidden_size=32,
    layers=1,
    dropout=0.0,
    numeric_data_size=8,
    linear_hidden_1=64,
    linear_hidden_2=32,
    classifier=False,
)


# ---------------------------------------------------------------------------
# Fused Pallas kernel: bidirectional GRU recurrence + MLP head
# ---------------------------------------------------------------------------
def _rnn_fused_kernel(x_ref,        # (B, T, E)  embedded tokens, batch-major
                      num_ref,      # (B, Nn)
                      wih_ref,      # (E, 6H)    [fwd r,z,n | bwd r,z,n], pre-packed
                      gi_bias_ref,  # (1, 6H)    b_ih + b_hh(r,z) folded; n part = b_ih only
                      whh_f_ref,    # (H, 3H)
                      whh_b_ref,    # (H, 3H)
                      bhh_nf_ref,   # (1, H)     b_hh n-gate, fwd (must stay inside r*(.))
                      bhh_nb_ref,   # (1, H)
                      w1f_ref, w1b_ref, w1n_ref, b1_ref,   # w1 split: (H,L1),(H,L1),(Nn,L1),(1,L1)
                      a1n_ref,      # (1, Nn)    PReLU1 slopes for the numeric channels
                      a2_ref, w2_ref, b2_ref,              # (1,L1),(L1,L2),(1,L2)
                      a3_ref, w3_ref, b3_ref,              # (1,L2),(L2,1),(1,1)
                      out_ref):     # (B, 1)
    B, T, E = x_ref.shape
    H = whh_f_ref.shape[0]

    # ---- Hoisted input projection: one well-shaped matmul, off the serial chain ----
    x_flat = x_ref[...].reshape(B * T, E)
    gi_all = (jnp.dot(x_flat, wih_ref[...], preferred_element_type=jnp.float32)
              + gi_bias_ref[...])                      # (B*T, 6H)
    gi_all = gi_all.reshape(B, T, 6 * H)

    whh_f = whh_f_ref[...]
    whh_b = whh_b_ref[...]
    bhh_nf = bhh_nf_ref[...]
    bhh_nb = bhh_nb_ref[...]

    def step(h, gi, whh, bhh_n):
        # PyTorch GRU cell (gate order r, z, n); b_ih and b_hh(r,z) already in gi.
        gh = jnp.dot(h, whh, preferred_element_type=jnp.float32)      # (B, 3H)
        rz = jax.nn.sigmoid(gi[:, :2 * H] + gh[:, :2 * H])            # one wide EUP push
        r = rz[:, :H]
        z = rz[:, H:]
        n = jnp.tanh(gi[:, 2 * H:] + r * (gh[:, 2 * H:] + bhh_n))
        return (1.0 - z) * n + z * h

    h_f = jnp.zeros((B, H), jnp.float32)
    h_b = jnp.zeros((B, H), jnp.float32)
    # Fully unrolled (T static, small); both direction chains interleaved so the
    # scheduler can overlap their MXU/EUP latencies. All slices below are static.
    for t in range(T):
        h_f = step(h_f, gi_all[:, t, :3 * H], whh_f, bhh_nf)
        h_b = step(h_b, gi_all[:, T - 1 - t, 3 * H:], whh_b, bhh_nb)

    # ---- MLP head (no concat: w1 pre-split into fwd / bwd / numeric blocks) ----
    def prelu(x, a):
        return jnp.where(x >= 0.0, x, a * x)

    # PReLU applied to relu(rnn_out) is the identity (relu output >= 0), so only the
    # numeric channels' PReLU1 slopes have an effect.
    rf = jnp.maximum(h_f, 0.0)
    rb = jnp.maximum(h_b, 0.0)
    num_p = prelu(num_ref[...], a1n_ref[...])
    h1 = (jnp.dot(rf, w1f_ref[...], preferred_element_type=jnp.float32)
          + jnp.dot(rb, w1b_ref[...], preferred_element_type=jnp.float32)
          + jnp.dot(num_p, w1n_ref[...], preferred_element_type=jnp.float32)
          + b1_ref[...])
    h1 = prelu(h1, a2_ref[...])
    h2 = jnp.dot(h1, w2_ref[...], preferred_element_type=jnp.float32) + b2_ref[...]
    hidden = prelu(h2, a3_ref[...])
    out = jnp.dot(hidden, w3_ref[...], preferred_element_type=jnp.float32) + b3_ref[...]
    out_ref[...] = jnp.maximum(out, 0.0)   # config['classifier'] == False path


# ---------------------------------------------------------------------------
# Wrappers
# ---------------------------------------------------------------------------
def _vmem():
    return pl.BlockSpec(memory_space=pltpu.MemorySpace.VMEM)


def pack_params(p):
    """One-time repack of PyTorch-layout params into the fused-kernel layout."""
    H = CONFIG['hidden_size']
    zeros_h = jnp.zeros((1, H), jnp.float32)
    # Fold b_hh for the r and z gates into the precomputed input-projection bias;
    # the n-gate b_hh must stay inside the r*(...) term, so it is passed separately.
    fold_f = jnp.concatenate([p['bhh_f'][:, :2 * H], zeros_h], axis=1)
    fold_b = jnp.concatenate([p['bhh_b'][:, :2 * H], zeros_h], axis=1)
    w1 = p['w1']
    return dict(
        emb=p['emb'],
        wih=jnp.concatenate([p['wih_f'], p['wih_b']], axis=1),                  # (E, 6H)
        gi_bias=jnp.concatenate([p['bih_f'] + fold_f, p['bih_b'] + fold_b], axis=1),
        whh_f=p['whh_f'], whh_b=p['whh_b'],
        bhh_nf=p['bhh_f'][:, 2 * H:], bhh_nb=p['bhh_b'][:, 2 * H:],
        w1f=w1[:H, :], w1b=w1[H:2 * H, :], w1n=w1[2 * H:, :], b1=p['b1'],
        a1n=p['a1'][:, 2 * H:],
        a2=p['a2'], w2=p['w2'], b2=p['b2'],
        a3=p['a3'], w3=p['w3'], b3=p['b3'],
    )


def rnn_forward(x_tokens, numeric_data, packed):
    # Embedding lookup stays in XLA (tiny gather); everything else is one fused kernel.
    x_emb = jnp.take(packed['emb'], x_tokens, axis=0).astype(jnp.float32)   # (B, T, E)
    B = x_tokens.shape[0]
    return pl.pallas_call(
        _rnn_fused_kernel,
        out_shape=jax.ShapeDtypeStruct((B, 1), jnp.float32),
        in_specs=[_vmem()] * 19,
        out_specs=_vmem(),
    )(x_emb, numeric_data,
      packed['wih'], packed['gi_bias'],
      packed['whh_f'], packed['whh_b'],
      packed['bhh_nf'], packed['bhh_nb'],
      packed['w1f'], packed['w1b'], packed['w1n'], packed['b1'],
      packed['a1n'],
      packed['a2'], packed['w2'], packed['b2'],
      packed['a3'], packed['w3'], packed['b3'])


# ---------------------------------------------------------------------------
# Deterministic parameter initialisation (synthetic; mirrors PyTorch shapes)
# ---------------------------------------------------------------------------
def init_params(key):
    cfg = CONFIG
    E, H = cfg['emb_dim'], cfg['hidden_size']
    Nn = cfg['numeric_data_size']
    gru_out = 2 * H * cfg['layers']
    L1, L2 = cfg['linear_hidden_1'], cfg['linear_hidden_2']

    keys = jax.random.split(key, 16)
    ki = iter(keys)

    def unif(k, shape, bound):
        return jax.random.uniform(k, shape, jnp.float32, -bound, bound)

    kg = 1.0 / jnp.sqrt(H)
    params = {
        'emb': jax.random.normal(next(ki), (cfg['AE_vocab_size'] + 1, E), jnp.float32),
        # GRU weights, stored transposed: (in, 3H) / (H, 3H); biases as (1, 3H).
        'wih_f': unif(next(ki), (E, 3 * H), kg),
        'whh_f': unif(next(ki), (H, 3 * H), kg),
        'bih_f': unif(next(ki), (1, 3 * H), kg),
        'bhh_f': unif(next(ki), (1, 3 * H), kg),
        'wih_b': unif(next(ki), (E, 3 * H), kg),
        'whh_b': unif(next(ki), (H, 3 * H), kg),
        'bih_b': unif(next(ki), (1, 3 * H), kg),
        'bhh_b': unif(next(ki), (1, 3 * H), kg),
        # PReLU slopes (PyTorch default 0.25), one per channel.
        'a1': jnp.full((1, gru_out + Nn), 0.25, jnp.float32),
        'a2': jnp.full((1, L1), 0.25, jnp.float32),
        'a3': jnp.full((1, L2), 0.25, jnp.float32),
        # Linear layers, weights stored transposed (in, out).
        'w1': unif(next(ki), (gru_out + Nn, L1), 1.0 / jnp.sqrt(gru_out + Nn)),
        'b1': unif(next(ki), (1, L1), 1.0 / jnp.sqrt(gru_out + Nn)),
        'w2': unif(next(ki), (L1, L2), 1.0 / jnp.sqrt(L1)),
        'b2': unif(next(ki), (1, L2), 1.0 / jnp.sqrt(L1)),
        'w3': unif(next(ki), (L2, 1), 1.0 / jnp.sqrt(L2)),
        'b3': unif(next(ki), (1, 1), 1.0 / jnp.sqrt(L2)),
    }
    return params


if __name__ == "__main__":
    key = jax.random.PRNGKey(0)
    k_par, k_tok, k_num = jax.random.split(key, 3)

    B, T = 2, 8
    params = init_params(k_par)
    packed = pack_params(params)          # one-time repack for the fused kernel
    x_tokens = jax.random.randint(
        k_tok, (B, T), 0, CONFIG['AE_vocab_size'] + 1, dtype=jnp.int32)
    numeric = jax.random.normal(
        k_num, (B, CONFIG['numeric_data_size']), jnp.float32)

    out = jax.jit(rnn_forward)(x_tokens, numeric, packed)
    out = jax.block_until_ready(out)
    assert out.shape == (B, 1) and out.dtype == jnp.float32
    print("KERNEL_OK")
</pallas_src>

<mosaic_0001>
module attributes {stable_mosaic.version = 11 : i64} {
  func.func @_rnn_fused_kernel(%arg0: memref<2x8x16xf32, #tpu.memory_space<vmem>>, %arg1: memref<2x8xf32, #tpu.memory_space<vmem>>, %arg2: memref<16x192xf32, #tpu.memory_space<vmem>>, %arg3: memref<1x192xf32, #tpu.memory_space<vmem>>, %arg4: memref<32x96xf32, #tpu.memory_space<vmem>>, %arg5: memref<32x96xf32, #tpu.memory_space<vmem>>, %arg6: memref<1x32xf32, #tpu.memory_space<vmem>>, %arg7: memref<1x32xf32, #tpu.memory_space<vmem>>, %arg8: memref<32x64xf32, #tpu.memory_space<vmem>>, %arg9: memref<32x64xf32, #tpu.memory_space<vmem>>, %arg10: memref<8x64xf32, #tpu.memory_space<vmem>>, %arg11: memref<1x64xf32, #tpu.memory_space<vmem>>, %arg12: memref<1x8xf32, #tpu.memory_space<vmem>>, %arg13: memref<1x64xf32, #tpu.memory_space<vmem>>, %arg14: memref<64x32xf32, #tpu.memory_space<vmem>>, %arg15: memref<1x32xf32, #tpu.memory_space<vmem>>, %arg16: memref<1x32xf32, #tpu.memory_space<vmem>>, %arg17: memref<32x1xf32, #tpu.memory_space<vmem>>, %arg18: memref<1x1xf32, #tpu.memory_space<vmem>>, %arg19: memref<2x1xf32, #tpu.memory_space<vmem>>) attributes {dimension_semantics = [], scalar_prefetch = 0 : i64, scratch_operands = 0 : i64, tpu.core_type = #tpu.core_type<tc>} {
    %c0 = arith.constant 0 : index
    %c0_0 = arith.constant 0 : index
    %c0_1 = arith.constant 0 : index
    %0 = vector.load %arg0[%c0, %c0_0, %c0_1] : memref<2x8x16xf32, #tpu.memory_space<vmem>>, vector<2x8x16xf32>
    %1 = vector.shape_cast %0 : vector<2x8x16xf32> to vector<16x16xf32>
    %c0_2 = arith.constant 0 : index
    %c0_3 = arith.constant 0 : index
    %2 = vector.load %arg2[%c0_2, %c0_3] : memref<16x192xf32, #tpu.memory_space<vmem>>, vector<16x192xf32>
    %cst = arith.constant dense<0.000000e+00> : vector<16x192xf32>
    %3 = tpu.matmul %1, %2, %cst {dimension_numbers = #tpu.dot_dimension_numbers<[1], [0], [0], [1], [0, 0, 1, 1], [], []>} : vector<16x16xf32>, vector<16x192xf32>, vector<16x192xf32> -> vector<16x192xf32>
    %c0_4 = arith.constant 0 : index
    %c0_5 = arith.constant 0 : index
    %4 = vector.load %arg3[%c0_4, %c0_5] : memref<1x192xf32, #tpu.memory_space<vmem>>, vector<1x192xf32>
    %5 = vector.broadcast %4 : vector<1x192xf32> to vector<16x192xf32>
    %6 = arith.addf %3, %5 : vector<16x192xf32>
    %7 = vector.shape_cast %6 : vector<16x192xf32> to vector<2x8x192xf32>
    %c0_6 = arith.constant 0 : index
    %c0_7 = arith.constant 0 : index
    %8 = vector.load %arg4[%c0_6, %c0_7] : memref<32x96xf32, #tpu.memory_space<vmem>>, vector<32x96xf32>
    %c0_8 = arith.constant 0 : index
    %c0_9 = arith.constant 0 : index
    %9 = vector.load %arg5[%c0_8, %c0_9] : memref<32x96xf32, #tpu.memory_space<vmem>>, vector<32x96xf32>
    %c0_10 = arith.constant 0 : index
    %c0_11 = arith.constant 0 : index
    %10 = vector.load %arg6[%c0_10, %c0_11] : memref<1x32xf32, #tpu.memory_space<vmem>>, vector<1x32xf32>
    %c0_12 = arith.constant 0 : index
    %c0_13 = arith.constant 0 : index
    %11 = vector.load %arg7[%c0_12, %c0_13] : memref<1x32xf32, #tpu.memory_space<vmem>>, vector<1x32xf32>
    %cst_14 = arith.constant 0.000000e+00 : f32
    %12 = vector.broadcast %cst_14 : f32 to vector<2x32xf32>
    %cst_15 = arith.constant 0.000000e+00 : f32
    %13 = vector.broadcast %cst_15 : f32 to vector<2x32xf32>
    %14 = vector.extract_strided_slice %7 {offsets = [0, 0, 0], sizes = [2, 1, 96], strides = [1, 1, 1]} : vector<2x8x192xf32> to vector<2x1x96xf32>
    %15 = vector.shape_cast %14 : vector<2x1x96xf32> to vector<2x96xf32>
    %cst_16 = arith.constant dense<0.000000e+00> : vector<2x96xf32>
    %16 = tpu.matmul %12, %8, %cst_16 {dimension_numbers = #tpu.dot_dimension_numbers<[1], [0], [0], [1], [0, 0, 1, 1], [], []>} : vector<2x32xf32>, vector<32x96xf32>, vector<2x96xf32> -> vector<2x96xf32>
    %17 = vector.extract_strided_slice %15 {offsets = [0, 0], sizes = [2, 64], strides = [1, 1]} : vector<2x96xf32> to vector<2x64xf32>
    %18 = vector.extract_strided_slice %16 {offsets = [0, 0], sizes = [2, 64], strides = [1, 1]} : vector<2x96xf32> to vector<2x64xf32>
    %19 = arith.addf %17, %18 : vector<2x64xf32>
    %20 = arith.negf %19 : vector<2x64xf32>
    %21 = math.exp %20 : vector<2x64xf32>
    %cst_17 = arith.constant 1.000000e+00 : f32
    %22 = vector.broadcast %cst_17 : f32 to vector<2x64xf32>
    %23 = arith.addf %22, %21 : vector<2x64xf32>
    %24 = arith.divf %22, %23 : vector<2x64xf32>
    %25 = vector.extract_strided_slice %24 {offsets = [0, 0], sizes = [2, 32], strides = [1, 1]} : vector<2x64xf32> to vector<2x32xf32>
    %26 = vector.extract_strided_slice %24 {offsets = [0, 32], sizes = [2, 32], strides = [1, 1]} : vector<2x64xf32> to vector<2x32xf32>
    %27 = vector.extract_strided_slice %15 {offsets = [0, 64], sizes = [2, 32], strides = [1, 1]} : vector<2x96xf32> to vector<2x32xf32>
    %28 = vector.extract_strided_slice %16 {offsets = [0, 64], sizes = [2, 32], strides = [1, 1]} : vector<2x96xf32> to vector<2x32xf32>
    %29 = vector.broadcast %10 : vector<1x32xf32> to vector<2x32xf32>
    %30 = arith.addf %28, %29 : vector<2x32xf32>
    %31 = arith.mulf %25, %30 : vector<2x32xf32>
    %32 = arith.addf %27, %31 : vector<2x32xf32>
    %33 = math.tanh %32 : vector<2x32xf32>
    %cst_18 = arith.constant 1.000000e+00 : f32
    %34 = vector.broadcast %cst_18 : f32 to vector<2x32xf32>
    %35 = arith.subf %34, %26 : vector<2x32xf32>
    %36 = arith.mulf %35, %33 : vector<2x32xf32>
    %37 = arith.mulf %26, %12 : vector<2x32xf32>
    %38 = arith.addf %36, %37 : vector<2x32xf32>
    %39 = vector.extract_strided_slice %7 {offsets = [0, 7, 96], sizes = [2, 1, 96], strides = [1, 1, 1]} : vector<2x8x192xf32> to vector<2x1x96xf32>
    %40 = vector.shape_cast %39 : vector<2x1x96xf32> to vector<2x96xf32>
    %cst_19 = arith.constant dense<0.000000e+00> : vector<2x96xf32>
    %41 = tpu.matmul %13, %9, %cst_19 {dimension_numbers = #tpu.dot_dimension_numbers<[1], [0], [0], [1], [0, 0, 1, 1], [], []>} : vector<2x32xf32>, vector<32x96xf32>, vector<2x96xf32> -> vector<2x96xf32>
    %42 = vector.extract_strided_slice %40 {offsets = [0, 0], sizes = [2, 64], strides = [1, 1]} : vector<2x96xf32> to vector<2x64xf32>
    %43 = vector.extract_strided_slice %41 {offsets = [0, 0], sizes = [2, 64], strides = [1, 1]} : vector<2x96xf32> to vector<2x64xf32>
    %44 = arith.addf %42, %43 : vector<2x64xf32>
    %45 = arith.negf %44 : vector<2x64xf32>
    %46 = math.exp %45 : vector<2x64xf32>
    %cst_20 = arith.constant 1.000000e+00 : f32
    %47 = vector.broadcast %cst_20 : f32 to vector<2x64xf32>
    %48 = arith.addf %47, %46 : vector<2x64xf32>
    %49 = arith.divf %47, %48 : vector<2x64xf32>
    %50 = vector.extract_strided_slice %49 {offsets = [0, 0], sizes = [2, 32], strides = [1, 1]} : vector<2x64xf32> to vector<2x32xf32>
    %51 = vector.extract_strided_slice %49 {offsets = [0, 32], sizes = [2, 32], strides = [1, 1]} : vector<2x64xf32> to vector<2x32xf32>
    %52 = vector.extract_strided_slice %40 {offsets = [0, 64], sizes = [2, 32], strides = [1, 1]} : vector<2x96xf32> to vector<2x32xf32>
    %53 = vector.extract_strided_slice %41 {offsets = [0, 64], sizes = [2, 32], strides = [1, 1]} : vector<2x96xf32> to vector<2x32xf32>
    %54 = vector.broadcast %11 : vector<1x32xf32> to vector<2x32xf32>
    %55 = arith.addf %53, %54 : vector<2x32xf32>
    %56 = arith.mulf %50, %55 : vector<2x32xf32>
    %57 = arith.addf %52, %56 : vector<2x32xf32>
    %58 = math.tanh %57 : vector<2x32xf32>
    %cst_21 = arith.constant 1.000000e+00 : f32
    %59 = vector.broadcast %cst_21 : f32 to vector<2x32xf32>
    %60 = arith.subf %59, %51 : vector<2x32xf32>
    %61 = arith.mulf %60, %58 : vector<2x32xf32>
    %62 = arith.mulf %51, %13 : vector<2x32xf32>
    %63 = arith.addf %61, %62 : vector<2x32xf32>
    %64 = vector.extract_strided_slice %7 {offsets = [0, 1, 0], sizes = [2, 1, 96], strides = [1, 1, 1]} : vector<2x8x192xf32> to vector<2x1x96xf32>
    %65 = vector.shape_cast %64 : vector<2x1x96xf32> to vector<2x96xf32>
    %cst_22 = arith.constant dense<0.000000e+00> : vector<2x96xf32>
    %66 = tpu.matmul %38, %8, %cst_22 {dimension_numbers = #tpu.dot_dimension_numbers<[1], [0], [0], [1], [0, 0, 1, 1], [], []>} : vector<2x32xf32>, vector<32x96xf32>, vector<2x96xf32> -> vector<2x96xf32>
    %67 = vector.extract_strided_slice %65 {offsets = [0, 0], sizes = [2, 64], strides = [1, 1]} : vector<2x96xf32> to vector<2x64xf32>
    %68 = vector.extract_strided_slice %66 {offsets = [0, 0], sizes = [2, 64], strides = [1, 1]} : vector<2x96xf32> to vector<2x64xf32>
    %69 = arith.addf %67, %68 : vector<2x64xf32>
    %70 = arith.negf %69 : vector<2x64xf32>
    %71 = math.exp %70 : vector<2x64xf32>
    %cst_23 = arith.constant 1.000000e+00 : f32
    %72 = vector.broadcast %cst_23 : f32 to vector<2x64xf32>
    %73 = arith.addf %72, %71 : vector<2x64xf32>
    %74 = arith.divf %72, %73 : vector<2x64xf32>
    %75 = vector.extract_strided_slice %74 {offsets = [0, 0], sizes = [2, 32], strides = [1, 1]} : vector<2x64xf32> to vector<2x32xf32>
    %76 = vector.extract_strided_slice %74 {offsets = [0, 32], sizes = [2, 32], strides = [1, 1]} : vector<2x64xf32> to vector<2x32xf32>
    %77 = vector.extract_strided_slice %65 {offsets = [0, 64], sizes = [2, 32], strides = [1, 1]} : vector<2x96xf32> to vector<2x32xf32>
    %78 = vector.extract_strided_slice %66 {offsets = [0, 64], sizes = [2, 32], strides = [1, 1]} : vector<2x96xf32> to vector<2x32xf32>
    %79 = vector.broadcast %10 : vector<1x32xf32> to vector<2x32xf32>
    %80 = arith.addf %78, %79 : vector<2x32xf32>
    %81 = arith.mulf %75, %80 : vector<2x32xf32>
    %82 = arith.addf %77, %81 : vector<2x32xf32>
    %83 = math.tanh %82 : vector<2x32xf32>
    %cst_24 = arith.constant 1.000000e+00 : f32
    %84 = vector.broadcast %cst_24 : f32 to vector<2x32xf32>
    %85 = arith.subf %84, %76 : vector<2x32xf32>
    %86 = arith.mulf %85, %83 : vector<2x32xf32>
    %87 = arith.mulf %76, %38 : vector<2x32xf32>
    %88 = arith.addf %86, %87 : vector<2x32xf32>
    %89 = vector.extract_strided_slice %7 {offsets = [0, 6, 96], sizes = [2, 1, 96], strides = [1, 1, 1]} : vector<2x8x192xf32> to vector<2x1x96xf32>
    %90 = vector.shape_cast %89 : vector<2x1x96xf32> to vector<2x96xf32>
    %cst_25 = arith.constant dense<0.000000e+00> : vector<2x96xf32>
    %91 = tpu.matmul %63, %9, %cst_25 {dimension_numbers = #tpu.dot_dimension_numbers<[1], [0], [0], [1], [0, 0, 1, 1], [], []>} : vector<2x32xf32>, vector<32x96xf32>, vector<2x96xf32> -> vector<2x96xf32>
    %92 = vector.extract_strided_slice %90 {offsets = [0, 0], sizes = [2, 64], strides = [1, 1]} : vector<2x96xf32> to vector<2x64xf32>
    %93 = vector.extract_strided_slice %91 {offsets = [0, 0], sizes = [2, 64], strides = [1, 1]} : vector<2x96xf32> to vector<2x64xf32>
    %94 = arith.addf %92, %93 : vector<2x64xf32>
    %95 = arith.negf %94 : vector<2x64xf32>
    %96 = math.exp %95 : vector<2x64xf32>
    %cst_26 = arith.constant 1.000000e+00 : f32
    %97 = vector.broadcast %cst_26 : f32 to vector<2x64xf32>
    %98 = arith.addf %97, %96 : vector<2x64xf32>
    %99 = arith.divf %97, %98 : vector<2x64xf32>
    %100 = vector.extract_strided_slice %99 {offsets = [0, 0], sizes = [2, 32], strides = [1, 1]} : vector<2x64xf32> to vector<2x32xf32>
    %101 = vector.extract_strided_slice %99 {offsets = [0, 32], sizes = [2, 32], strides = [1, 1]} : vector<2x64xf32> to vector<2x32xf32>
    %102 = vector.extract_strided_slice %90 {offsets = [0, 64], sizes = [2, 32], strides = [1, 1]} : vector<2x96xf32> to vector<2x32xf32>
    %103 = vector.extract_strided_slice %91 {offsets = [0, 64], sizes = [2, 32], strides = [1, 1]} : vector<2x96xf32> to vector<2x32xf32>
    %104 = vector.broadcast %11 : vector<1x32xf32> to vector<2x32xf32>
    %105 = arith.addf %103, %104 : vector<2x32xf32>
    %106 = arith.mulf %100, %105 : vector<2x32xf32>
    %107 = arith.addf %102, %106 : vector<2x32xf32>
    %108 = math.tanh %107 : vector<2x32xf32>
    %cst_27 = arith.constant 1.000000e+00 : f32
    %109 = vector.broadcast %cst_27 : f32 to vector<2x32xf32>
    %110 = arith.subf %109, %101 : vector<2x32xf32>
    %111 = arith.mulf %110, %108 : vector<2x32xf32>
    %112 = arith.mulf %101, %63 : vector<2x32xf32>
    %113 = arith.addf %111, %112 : vector<2x32xf32>
    %114 = vector.extract_strided_slice %7 {offsets = [0, 2, 0], sizes = [2, 1, 96], strides = [1, 1, 1]} : vector<2x8x192xf32> to vector<2x1x96xf32>
    %115 = vector.shape_cast %114 : vector<2x1x96xf32> to vector<2x96xf32>
    %cst_28 = arith.constant dense<0.000000e+00> : vector<2x96xf32>
    %116 = tpu.matmul %88, %8, %cst_28 {dimension_numbers = #tpu.dot_dimension_numbers<[1], [0], [0], [1], [0, 0, 1, 1], [], []>} : vector<2x32xf32>, vector<32x96xf32>, vector<2x96xf32> -> vector<2x96xf32>
    %117 = vector.extract_strided_slice %115 {offsets = [0, 0], sizes = [2, 64], strides = [1, 1]} : vector<2x96xf32> to vector<2x64xf32>
    %118 = vector.extract_strided_slice %116 {offsets = [0, 0], sizes = [2, 64], strides = [1, 1]} : vector<2x96xf32> to vector<2x64xf32>
    %119 = arith.addf %117, %118 : vector<2x64xf32>
    %120 = arith.negf %119 : vector<2x64xf32>
    %121 = math.exp %120 : vector<2x64xf32>
    %cst_29 = arith.constant 1.000000e+00 : f32
    %122 = vector.broadcast %cst_29 : f32 to vector<2x64xf32>
    %123 = arith.addf %122, %121 : vector<2x64xf32>
    %124 = arith.divf %122, %123 : vector<2x64xf32>
    %125 = vector.extract_strided_slice %124 {offsets = [0, 0], sizes = [2, 32], strides = [1, 1]} : vector<2x64xf32> to vector<2x32xf32>
    %126 = vector.extract_strided_slice %124 {offsets = [0, 32], sizes = [2, 32], strides = [1, 1]} : vector<2x64xf32> to vector<2x32xf32>
    %127 = vector.extract_strided_slice %115 {offsets = [0, 64], sizes = [2, 32], strides = [1, 1]} : vector<2x96xf32> to vector<2x32xf32>
    %128 = vector.extract_strided_slice %116 {offsets = [0, 64], sizes = [2, 32], strides = [1, 1]} : vector<2x96xf32> to vector<2x32xf32>
    %129 = vector.broadcast %10 : vector<1x32xf32> to vector<2x32xf32>
    %130 = arith.addf %128, %129 : vector<2x32xf32>
    %131 = arith.mulf %125, %130 : vector<2x32xf32>
    %132 = arith.addf %127, %131 : vector<2x32xf32>
    %133 = math.tanh %132 : vector<2x32xf32>
    %cst_30 = arith.constant 1.000000e+00 : f32
    %134 = vector.broadcast %cst_30 : f32 to vector<2x32xf32>
    %135 = arith.subf %134, %126 : vector<2x32xf32>
    %136 = arith.mulf %135, %133 : vector<2x32xf32>
    %137 = arith.mulf %126, %88 : vector<2x32xf32>
    %138 = arith.addf %136, %137 : vector<2x32xf32>
    %139 = vector.extract_strided_slice %7 {offsets = [0, 5, 96], sizes = [2, 1, 96], strides = [1, 1, 1]} : vector<2x8x192xf32> to vector<2x1x96xf32>
    %140 = vector.shape_cast %139 : vector<2x1x96xf32> to vector<2x96xf32>
    %cst_31 = arith.constant dense<0.000000e+00> : vector<2x96xf32>
    %141 = tpu.matmul %113, %9, %cst_31 {dimension_numbers = #tpu.dot_dimension_numbers<[1], [0], [0], [1], [0, 0, 1, 1], [], []>} : vector<2x32xf32>, vector<32x96xf32>, vector<2x96xf32> -> vector<2x96xf32>
    %142 = vector.extract_strided_slice %140 {offsets = [0, 0], sizes = [2, 64], strides = [1, 1]} : vector<2x96xf32> to vector<2x64xf32>
    %143 = vector.extract_strided_slice %141 {offsets = [0, 0], sizes = [2, 64], strides = [1, 1]} : vector<2x96xf32> to vector<2x64xf32>
    %144 = arith.addf %142, %143 : vector<2x64xf32>
    %145 = arith.negf %144 : vector<2x64xf32>
    %146 = math.exp %145 : vector<2x64xf32>
    %cst_32 = arith.constant 1.000000e+00 : f32
    %147 = vector.broadcast %cst_32 : f32 to vector<2x64xf32>
    %148 = arith.addf %147, %146 : vector<2x64xf32>
    %149 = arith.divf %147, %148 : vector<2x64xf32>
    %150 = vector.extract_strided_slice %149 {offsets = [0, 0], sizes = [2, 32], strides = [1, 1]} : vector<2x64xf32> to vector<2x32xf32>
    %151 = vector.extract_strided_slice %149 {offsets = [0, 32], sizes = [2, 32], strides = [1, 1]} : vector<2x64xf32> to vector<2x32xf32>
    %152 = vector.extract_strided_slice %140 {offsets = [0, 64], sizes = [2, 32], strides = [1, 1]} : vector<2x96xf32> to vector<2x32xf32>
    %153 = vector.extract_strided_slice %141 {offsets = [0, 64], sizes = [2, 32], strides = [1, 1]} : vector<2x96xf32> to vector<2x32xf32>
    %154 = vector.broadcast %11 : vector<1x32xf32> to vector<2x32xf32>
    %155 = arith.addf %153, %154 : vector<2x32xf32>
    %156 = arith.mulf %150, %155 : vector<2x32xf32>
    %157 = arith.addf %152, %156 : vector<2x32xf32>
    %158 = math.tanh %157 : vector<2x32xf32>
    %cst_33 = arith.constant 1.000000e+00 : f32
    %159 = vector.broadcast %cst_33 : f32 to vector<2x32xf32>
    %160 = arith.subf %159, %151 : vector<2x32xf32>
    %161 = arith.mulf %160, %158 : vector<2x32xf32>
    %162 = arith.mulf %151, %113 : vector<2x32xf32>
    %163 = arith.addf %161, %162 : vector<2x32xf32>
    %164 = vector.extract_strided_slice %7 {offsets = [0, 3, 0], sizes = [2, 1, 96], strides = [1, 1, 1]} : vector<2x8x192xf32> to vector<2x1x96xf32>
    %165 = vector.shape_cast %164 : vector<2x1x96xf32> to vector<2x96xf32>
    %cst_34 = arith.constant dense<0.000000e+00> : vector<2x96xf32>
    %166 = tpu.matmul %138, %8, %cst_34 {dimension_numbers = #tpu.dot_dimension_numbers<[1], [0], [0], [1], [0, 0, 1, 1], [], []>} : vector<2x32xf32>, vector<32x96xf32>, vector<2x96xf32> -> vector<2x96xf32>
    %167 = vector.extract_strided_slice %165 {offsets = [0, 0], sizes = [2, 64], strides = [1, 1]} : vector<2x96xf32> to vector<2x64xf32>
    %168 = vector.extract_strided_slice %166 {offsets = [0, 0], sizes = [2, 64], strides = [1, 1]} : vector<2x96xf32> to vector<2x64xf32>
    %169 = arith.addf %167, %168 : vector<2x64xf32>
    %170 = arith.negf %169 : vector<2x64xf32>
    %171 = math.exp %170 : vector<2x64xf32>
    %cst_35 = arith.constant 1.000000e+00 : f32
    %172 = vector.broadcast %cst_35 : f32 to vector<2x64xf32>
    %173 = arith.addf %172, %171 : vector<2x64xf32>
    %174 = arith.divf %172, %173 : vector<2x64xf32>
    %175 = vector.extract_strided_slice %174 {offsets = [0, 0], sizes = [2, 32], strides = [1, 1]} : vector<2x64xf32> to vector<2x32xf32>
    %176 = vector.extract_strided_slice %174 {offsets = [0, 32], sizes = [2, 32], strides = [1, 1]} : vector<2x64xf32> to vector<2x32xf32>
    %177 = vector.extract_strided_slice %165 {offsets = [0, 64], sizes = [2, 32], strides = [1, 1]} : vector<2x96xf32> to vector<2x32xf32>
    %178 = vector.extract_strided_slice %166 {offsets = [0, 64], sizes = [2, 32], strides = [1, 1]} : vector<2x96xf32> to vector<2x32xf32>
    %179 = vector.broadcast %10 : vector<1x32xf32> to vector<2x32xf32>
    %180 = arith.addf %178, %179 : vector<2x32xf32>
    %181 = arith.mulf %175, %180 : vector<2x32xf32>
    %182 = arith.addf %177, %181 : vector<2x32xf32>
    %183 = math.tanh %182 : vector<2x32xf32>
    %cst_36 = arith.constant 1.000000e+00 : f32
    %184 = vector.broadcast %cst_36 : f32 to vector<2x32xf32>
    %185 = arith.subf %184, %176 : vector<2x32xf32>
    %186 = arith.mulf %185, %183 : vector<2x32xf32>
    %187 = arith.mulf %176, %138 : vector<2x32xf32>
    %188 = arith.addf %186, %187 : vector<2x32xf32>
    %189 = vector.extract_strided_slice %7 {offsets = [0, 4, 96], sizes = [2, 1, 96], strides = [1, 1, 1]} : vector<2x8x192xf32> to vector<2x1x96xf32>
    %190 = vector.shape_cast %189 : vector<2x1x96xf32> to vector<2x96xf32>
    %cst_37 = arith.constant dense<0.000000e+00> : vector<2x96xf32>
    %191 = tpu.matmul %163, %9, %cst_37 {dimension_numbers = #tpu.dot_dimension_numbers<[1], [0], [0], [1], [0, 0, 1, 1], [], []>} : vector<2x32xf32>, vector<32x96xf32>, vector<2x96xf32> -> vector<2x96xf32>
    %192 = vector.extract_strided_slice %190 {offsets = [0, 0], sizes = [2, 64], strides = [1, 1]} : vector<2x96xf32> to vector<2x64xf32>
    %193 = vector.extract_strided_slice %191 {offsets = [0, 0], sizes = [2, 64], strides = [1, 1]} : vector<2x96xf32> to vector<2x64xf32>
    %194 = arith.addf %192, %193 : vector<2x64xf32>
    %195 = arith.negf %194 : vector<2x64xf32>
    %196 = math.exp %195 : vector<2x64xf32>
    %cst_38 = arith.constant 1.000000e+00 : f32
    %197 = vector.broadcast %cst_38 : f32 to vector<2x64xf32>
    %198 = arith.addf %197, %196 : vector<2x64xf32>
    %199 = arith.divf %197, %198 : vector<2x64xf32>
    %200 = vector.extract_strided_slice %199 {offsets = [0, 0], sizes = [2, 32], strides = [1, 1]} : vector<2x64xf32> to vector<2x32xf32>
    %201 = vector.extract_strided_slice %199 {offsets = [0, 32], sizes = [2, 32], strides = [1, 1]} : vector<2x64xf32> to vector<2x32xf32>
    %202 = vector.extract_strided_slice %190 {offsets = [0, 64], sizes = [2, 32], strides = [1, 1]} : vector<2x96xf32> to vector<2x32xf32>
    %203 = vector.extract_strided_slice %191 {offsets = [0, 64], sizes = [2, 32], strides = [1, 1]} : vector<2x96xf32> to vector<2x32xf32>
    %204 = vector.broadcast %11 : vector<1x32xf32> to vector<2x32xf32>
    %205 = arith.addf %203, %204 : vector<2x32xf32>
    %206 = arith.mulf %200, %205 : vector<2x32xf32>
    %207 = arith.addf %202, %206 : vector<2x32xf32>
    %208 = math.tanh %207 : vector<2x32xf32>
    %cst_39 = arith.constant 1.000000e+00 : f32
    %209 = vector.broadcast %cst_39 : f32 to vector<2x32xf32>
    %210 = arith.subf %209, %201 : vector<2x32xf32>
    %211 = arith.mulf %210, %208 : vector<2x32xf32>
    %212 = arith.mulf %201, %163 : vector<2x32xf32>
    %213 = arith.addf %211, %212 : vector<2x32xf32>
    %214 = vector.extract_strided_slice %7 {offsets = [0, 4, 0], sizes = [2, 1, 96], strides = [1, 1, 1]} : vector<2x8x192xf32> to vector<2x1x96xf32>
    %215 = vector.shape_cast %214 : vector<2x1x96xf32> to vector<2x96xf32>
    %cst_40 = arith.constant dense<0.000000e+00> : vector<2x96xf32>
    %216 = tpu.matmul %188, %8, %cst_40 {dimension_numbers = #tpu.dot_dimension_numbers<[1], [0], [0], [1], [0, 0, 1, 1], [], []>} : vector<2x32xf32>, vector<32x96xf32>, vector<2x96xf32> -> vector<2x96xf32>
    %217 = vector.extract_strided_slice %215 {offsets = [0, 0], sizes = [2, 64], strides = [1, 1]} : vector<2x96xf32> to vector<2x64xf32>
    %218 = vector.extract_strided_slice %216 {offsets = [0, 0], sizes = [2, 64], strides = [1, 1]} : vector<2x96xf32> to vector<2x64xf32>
    %219 = arith.addf %217, %218 : vector<2x64xf32>
    %220 = arith.negf %219 : vector<2x64xf32>
    %221 = math.exp %220 : vector<2x64xf32>
    %cst_41 = arith.constant 1.000000e+00 : f32
    %222 = vector.broadcast %cst_41 : f32 to vector<2x64xf32>
    %223 = arith.addf %222, %221 : vector<2x64xf32>
    %224 = arith.divf %222, %223 : vector<2x64xf32>
    %225 = vector.extract_strided_slice %224 {offsets = [0, 0], sizes = [2, 32], strides = [1, 1]} : vector<2x64xf32> to vector<2x32xf32>
    %226 = vector.extract_strided_slice %224 {offsets = [0, 32], sizes = [2, 32], strides = [1, 1]} : vector<2x64xf32> to vector<2x32xf32>
    %227 = vector.extract_strided_slice %215 {offsets = [0, 64], sizes = [2, 32], strides = [1, 1]} : vector<2x96xf32> to vector<2x32xf32>
    %228 = vector.extract_strided_slice %216 {offsets = [0, 64], sizes = [2, 32], strides = [1, 1]} : vector<2x96xf32> to vector<2x32xf32>
    %229 = vector.broadcast %10 : vector<1x32xf32> to vector<2x32xf32>
    %230 = arith.addf %228, %229 : vector<2x32xf32>
    %231 = arith.mulf %225, %230 : vector<2x32xf32>
    %232 = arith.addf %227, %231 : vector<2x32xf32>
    %233 = math.tanh %232 : vector<2x32xf32>
    %cst_42 = arith.constant 1.000000e+00 : f32
    %234 = vector.broadcast %cst_42 : f32 to vector<2x32xf32>
    %235 = arith.subf %234, %226 : vector<2x32xf32>
    %236 = arith.mulf %235, %233 : vector<2x32xf32>
    %237 = arith.mulf %226, %188 : vector<2x32xf32>
    %238 = arith.addf %236, %237 : vector<2x32xf32>
    %239 = vector.extract_strided_slice %7 {offsets = [0, 3, 96], sizes = [2, 1, 96], strides = [1, 1, 1]} : vector<2x8x192xf32> to vector<2x1x96xf32>
    %240 = vector.shape_cast %239 : vector<2x1x96xf32> to vector<2x96xf32>
    %cst_43 = arith.constant dense<0.000000e+00> : vector<2x96xf32>
    %241 = tpu.matmul %213, %9, %cst_43 {dimension_numbers = #tpu.dot_dimension_numbers<[1], [0], [0], [1], [0, 0, 1, 1], [], []>} : vector<2x32xf32>, vector<32x96xf32>, vector<2x96xf32> -> vector<2x96xf32>
    %242 = vector.extract_strided_slice %240 {offsets = [0, 0], sizes = [2, 64], strides = [1, 1]} : vector<2x96xf32> to vector<2x64xf32>
    %243 = vector.extract_strided_slice %241 {offsets = [0, 0], sizes = [2, 64], strides = [1, 1]} : vector<2x96xf32> to vector<2x64xf32>
    %244 = arith.addf %242, %243 : vector<2x64xf32>
    %245 = arith.negf %244 : vector<2x64xf32>
    %246 = math.exp %245 : vector<2x64xf32>
    %cst_44 = arith.constant 1.000000e+00 : f32
    %247 = vector.broadcast %cst_44 : f32 to vector<2x64xf32>
    %248 = arith.addf %247, %246 : vector<2x64xf32>
    %249 = arith.divf %247, %248 : vector<2x64xf32>
    %250 = vector.extract_strided_slice %249 {offsets = [0, 0], sizes = [2, 32], strides = [1, 1]} : vector<2x64xf32> to vector<2x32xf32>
    %251 = vector.extract_strided_slice %249 {offsets = [0, 32], sizes = [2, 32], strides = [1, 1]} : vector<2x64xf32> to vector<2x32xf32>
    %252 = vector.extract_strided_slice %240 {offsets = [0, 64], sizes = [2, 32], strides = [1, 1]} : vector<2x96xf32> to vector<2x32xf32>
    %253 = vector.extract_strided_slice %241 {offsets = [0, 64], sizes = [2, 32], strides = [1, 1]} : vector<2x96xf32> to vector<2x32xf32>
    %254 = vector.broadcast %11 : vector<1x32xf32> to vector<2x32xf32>
    %255 = arith.addf %253, %254 : vector<2x32xf32>
    %256 = arith.mulf %250, %255 : vector<2x32xf32>
    %257 = arith.addf %252, %256 : vector<2x32xf32>
    %258 = math.tanh %257 : vector<2x32xf32>
    %cst_45 = arith.constant 1.000000e+00 : f32
    %259 = vector.broadcast %cst_45 : f32 to vector<2x32xf32>
    %260 = arith.subf %259, %251 : vector<2x32xf32>
    %261 = arith.mulf %260, %258 : vector<2x32xf32>
    %262 = arith.mulf %251, %213 : vector<2x32xf32>
    %263 = arith.addf %261, %262 : vector<2x32xf32>
    %264 = vector.extract_strided_slice %7 {offsets = [0, 5, 0], sizes = [2, 1, 96], strides = [1, 1, 1]} : vector<2x8x192xf32> to vector<2x1x96xf32>
    %265 = vector.shape_cast %264 : vector<2x1x96xf32> to vector<2x96xf32>
    %cst_46 = arith.constant dense<0.000000e+00> : vector<2x96xf32>
    %266 = tpu.matmul %238, %8, %cst_46 {dimension_numbers = #tpu.dot_dimension_numbers<[1], [0], [0], [1], [0, 0, 1, 1], [], []>} : vector<2x32xf32>, vector<32x96xf32>, vector<2x96xf32> -> vector<2x96xf32>
    %267 = vector.extract_strided_slice %265 {offsets = [0, 0], sizes = [2, 64], strides = [1, 1]} : vector<2x96xf32> to vector<2x64xf32>
    %268 = vector.extract_strided_slice %266 {offsets = [0, 0], sizes = [2, 64], strides = [1, 1]} : vector<2x96xf32> to vector<2x64xf32>
    %269 = arith.addf %267, %268 : vector<2x64xf32>
    %270 = arith.negf %269 : vector<2x64xf32>
    %271 = math.exp %270 : vector<2x64xf32>
    %cst_47 = arith.constant 1.000000e+00 : f32
    %272 = vector.broadcast %cst_47 : f32 to vector<2x64xf32>
    %273 = arith.addf %272, %271 : vector<2x64xf32>
    %274 = arith.divf %272, %273 : vector<2x64xf32>
    %275 = vector.extract_strided_slice %274 {offsets = [0, 0], sizes = [2, 32], strides = [1, 1]} : vector<2x64xf32> to vector<2x32xf32>
    %276 = vector.extract_strided_slice %274 {offsets = [0, 32], sizes = [2, 32], strides = [1, 1]} : vector<2x64xf32> to vector<2x32xf32>
    %277 = vector.extract_strided_slice %265 {offsets = [0, 64], sizes = [2, 32], strides = [1, 1]} : vector<2x96xf32> to vector<2x32xf32>
    %278 = vector.extract_strided_slice %266 {offsets = [0, 64], sizes = [2, 32], strides = [1, 1]} : vector<2x96xf32> to vector<2x32xf32>
    %279 = vector.broadcast %10 : vector<1x32xf32> to vector<2x32xf32>
    %280 = arith.addf %278, %279 : vector<2x32xf32>
    %281 = arith.mulf %275, %280 : vector<2x32xf32>
    %282 = arith.addf %277, %281 : vector<2x32xf32>
    %283 = math.tanh %282 : vector<2x32xf32>
    %cst_48 = arith.constant 1.000000e+00 : f32
    %284 = vector.broadcast %cst_48 : f32 to vector<2x32xf32>
    %285 = arith.subf %284, %276 : vector<2x32xf32>
    %286 = arith.mulf %285, %283 : vector<2x32xf32>
    %287 = arith.mulf %276, %238 : vector<2x32xf32>
    %288 = arith.addf %286, %287 : vector<2x32xf32>
    %289 = vector.extract_strided_slice %7 {offsets = [0, 2, 96], sizes = [2, 1, 96], strides = [1, 1, 1]} : vector<2x8x192xf32> to vector<2x1x96xf32>
    %290 = vector.shape_cast %289 : vector<2x1x96xf32> to vector<2x96xf32>
    %cst_49 = arith.constant dense<0.000000e+00> : vector<2x96xf32>
    %291 = tpu.matmul %263, %9, %cst_49 {dimension_numbers = #tpu.dot_dimension_numbers<[1], [0], [0], [1], [0, 0, 1, 1], [], []>} : vector<2x32xf32>, vector<32x96xf32>, vector<2x96xf32> -> vector<2x96xf32>
    %292 = vector.extract_strided_slice %290 {offsets = [0, 0], sizes = [2, 64], strides = [1, 1]} : vector<2x96xf32> to vector<2x64xf32>
    %293 = vector.extract_strided_slice %291 {offsets = [0, 0], sizes = [2, 64], strides = [1, 1]} : vector<2x96xf32> to vector<2x64xf32>
    %294 = arith.addf %292, %293 : vector<2x64xf32>
    %295 = arith.negf %294 : vector<2x64xf32>
    %296 = math.exp %295 : vector<2x64xf32>
    %cst_50 = arith.constant 1.000000e+00 : f32
    %297 = vector.broadcast %cst_50 : f32 to vector<2x64xf32>
    %298 = arith.addf %297, %296 : vector<2x64xf32>
    %299 = arith.divf %297, %298 : vector<2x64xf32>
    %300 = vector.extract_strided_slice %299 {offsets = [0, 0], sizes = [2, 32], strides = [1, 1]} : vector<2x64xf32> to vector<2x32xf32>
    %301 = vector.extract_strided_slice %299 {offsets = [0, 32], sizes = [2, 32], strides = [1, 1]} : vector<2x64xf32> to vector<2x32xf32>
    %302 = vector.extract_strided_slice %290 {offsets = [0, 64], sizes = [2, 32], strides = [1, 1]} : vector<2x96xf32> to vector<2x32xf32>
    %303 = vector.extract_strided_slice %291 {offsets = [0, 64], sizes = [2, 32], strides = [1, 1]} : vector<2x96xf32> to vector<2x32xf32>
    %304 = vector.broadcast %11 : vector<1x32xf32> to vector<2x32xf32>
    %305 = arith.addf %303, %304 : vector<2x32xf32>
    %306 = arith.mulf %300, %305 : vector<2x32xf32>
    %307 = arith.addf %302, %306 : vector<2x32xf32>
    %308 = math.tanh %307 : vector<2x32xf32>
    %cst_51 = arith.constant 1.000000e+00 : f32
    %309 = vector.broadcast %cst_51 : f32 to vector<2x32xf32>
    %310 = arith.subf %309, %301 : vector<2x32xf32>
    %311 = arith.mulf %310, %308 : vector<2x32xf32>
    %312 = arith.mulf %301, %263 : vector<2x32xf32>
    %313 = arith.addf %311, %312 : vector<2x32xf32>
    %314 = vector.extract_strided_slice %7 {offsets = [0, 6, 0], sizes = [2, 1, 96], strides = [1, 1, 1]} : vector<2x8x192xf32> to vector<2x1x96xf32>
    %315 = vector.shape_cast %314 : vector<2x1x96xf32> to vector<2x96xf32>
    %cst_52 = arith.constant dense<0.000000e+00> : vector<2x96xf32>
    %316 = tpu.matmul %288, %8, %cst_52 {dimension_numbers = #tpu.dot_dimension_numbers<[1], [0], [0], [1], [0, 0, 1, 1], [], []>} : vector<2x32xf32>, vector<32x96xf32>, vector<2x96xf32> -> vector<2x96xf32>
    %317 = vector.extract_strided_slice %315 {offsets = [0, 0], sizes = [2, 64], strides = [1, 1]} : vector<2x96xf32> to vector<2x64xf32>
    %318 = vector.extract_strided_slice %316 {offsets = [0, 0], sizes = [2, 64], strides = [1, 1]} : vector<2x96xf32> to vector<2x64xf32>
    %319 = arith.addf %317, %318 : vector<2x64xf32>
    %320 = arith.negf %319 : vector<2x64xf32>
    %321 = math.exp %320 : vector<2x64xf32>
    %cst_53 = arith.constant 1.000000e+00 : f32
    %322 = vector.broadcast %cst_53 : f32 to vector<2x64xf32>
    %323 = arith.addf %322, %321 : vector<2x64xf32>
    %324 = arith.divf %322, %323 : vector<2x64xf32>
    %325 = vector.extract_strided_slice %324 {offsets = [0, 0], sizes = [2, 32], strides = [1, 1]} : vector<2x64xf32> to vector<2x32xf32>
    %326 = vector.extract_strided_slice %324 {offsets = [0, 32], sizes = [2, 32], strides = [1, 1]} : vector<2x64xf32> to vector<2x32xf32>
    %327 = vector.extract_strided_slice %315 {offsets = [0, 64], sizes = [2, 32], strides = [1, 1]} : vector<2x96xf32> to vector<2x32xf32>
    %328 = vector.extract_strided_slice %316 {offsets = [0, 64], sizes = [2, 32], strides = [1, 1]} : vector<2x96xf32> to vector<2x32xf32>
    %329 = vector.broadcast %10 : vector<1x32xf32> to vector<2x32xf32>
    %330 = arith.addf %328, %329 : vector<2x32xf32>
    %331 = arith.mulf %325, %330 : vector<2x32xf32>
    %332 = arith.addf %327, %331 : vector<2x32xf32>
    %333 = math.tanh %332 : vector<2x32xf32>
    %cst_54 = arith.constant 1.000000e+00 : f32
    %334 = vector.broadcast %cst_54 : f32 to vector<2x32xf32>
    %335 = arith.subf %334, %326 : vector<2x32xf32>
    %336 = arith.mulf %335, %333 : vector<2x32xf32>
    %337 = arith.mulf %326, %288 : vector<2x32xf32>
    %338 = arith.addf %336, %337 : vector<2x32xf32>
    %339 = vector.extract_strided_slice %7 {offsets = [0, 1, 96], sizes = [2, 1, 96], strides = [1, 1, 1]} : vector<2x8x192xf32> to vector<2x1x96xf32>
    %340 = vector.shape_cast %339 : vector<2x1x96xf32> to vector<2x96xf32>
    %cst_55 = arith.constant dense<0.000000e+00> : vector<2x96xf32>
    %341 = tpu.matmul %313, %9, %cst_55 {dimension_numbers = #tpu.dot_dimension_numbers<[1], [0], [0], [1], [0, 0, 1, 1], [], []>} : vector<2x32xf32>, vector<32x96xf32>, vector<2x96xf32> -> vector<2x96xf32>
    %342 = vector.extract_strided_slice %340 {offsets = [0, 0], sizes = [2, 64], strides = [1, 1]} : vector<2x96xf32> to vector<2x64xf32>
    %343 = vector.extract_strided_slice %341 {offsets = [0, 0], sizes = [2, 64], strides = [1, 1]} : vector<2x96xf32> to vector<2x64xf32>
    %344 = arith.addf %342, %343 : vector<2x64xf32>
    %345 = arith.negf %344 : vector<2x64xf32>
    %346 = math.exp %345 : vector<2x64xf32>
    %cst_56 = arith.constant 1.000000e+00 : f32
    %347 = vector.broadcast %cst_56 : f32 to vector<2x64xf32>
    %348 = arith.addf %347, %346 : vector<2x64xf32>
    %349 = arith.divf %347, %348 : vector<2x64xf32>
    %350 = vector.extract_strided_slice %349 {offsets = [0, 0], sizes = [2, 32], strides = [1, 1]} : vector<2x64xf32> to vector<2x32xf32>
    %351 = vector.extract_strided_slice %349 {offsets = [0, 32], sizes = [2, 32], strides = [1, 1]} : vector<2x64xf32> to vector<2x32xf32>
    %352 = vector.extract_strided_slice %340 {offsets = [0, 64], sizes = [2, 32], strides = [1, 1]} : vector<2x96xf32> to vector<2x32xf32>
    %353 = vector.extract_strided_slice %341 {offsets = [0, 64], sizes = [2, 32], strides = [1, 1]} : vector<2x96xf32> to vector<2x32xf32>
    %354 = vector.broadcast %11 : vector<1x32xf32> to vector<2x32xf32>
    %355 = arith.addf %353, %354 : vector<2x32xf32>
    %356 = arith.mulf %350, %355 : vector<2x32xf32>
    %357 = arith.addf %352, %356 : vector<2x32xf32>
    %358 = math.tanh %357 : vector<2x32xf32>
    %cst_57 = arith.constant 1.000000e+00 : f32
    %359 = vector.broadcast %cst_57 : f32 to vector<2x32xf32>
    %360 = arith.subf %359, %351 : vector<2x32xf32>
    %361 = arith.mulf %360, %358 : vector<2x32xf32>
    %362 = arith.mulf %351, %313 : vector<2x32xf32>
    %363 = arith.addf %361, %362 : vector<2x32xf32>
    %364 = vector.extract_strided_slice %7 {offsets = [0, 7, 0], sizes = [2, 1, 96], strides = [1, 1, 1]} : vector<2x8x192xf32> to vector<2x1x96xf32>
    %365 = vector.shape_cast %364 : vector<2x1x96xf32> to vector<2x96xf32>
    %cst_58 = arith.constant dense<0.000000e+00> : vector<2x96xf32>
    %366 = tpu.matmul %338, %8, %cst_58 {dimension_numbers = #tpu.dot_dimension_numbers<[1], [0], [0], [1], [0, 0, 1, 1], [], []>} : vector<2x32xf32>, vector<32x96xf32>, vector<2x96xf32> -> vector<2x96xf32>
    %367 = vector.extract_strided_slice %365 {offsets = [0, 0], sizes = [2, 64], strides = [1, 1]} : vector<2x96xf32> to vector<2x64xf32>
    %368 = vector.extract_strided_slice %366 {offsets = [0, 0], sizes = [2, 64], strides = [1, 1]} : vector<2x96xf32> to vector<2x64xf32>
    %369 = arith.addf %367, %368 : vector<2x64xf32>
    %370 = arith.negf %369 : vector<2x64xf32>
    %371 = math.exp %370 : vector<2x64xf32>
    %cst_59 = arith.constant 1.000000e+00 : f32
    %372 = vector.broadcast %cst_59 : f32 to vector<2x64xf32>
    %373 = arith.addf %372, %371 : vector<2x64xf32>
    %374 = arith.divf %372, %373 : vector<2x64xf32>
    %375 = vector.extract_strided_slice %374 {offsets = [0, 0], sizes = [2, 32], strides = [1, 1]} : vector<2x64xf32> to vector<2x32xf32>
    %376 = vector.extract_strided_slice %374 {offsets = [0, 32], sizes = [2, 32], strides = [1, 1]} : vector<2x64xf32> to vector<2x32xf32>
    %377 = vector.extract_strided_slice %365 {offsets = [0, 64], sizes = [2, 32], strides = [1, 1]} : vector<2x96xf32> to vector<2x32xf32>
    %378 = vector.extract_strided_slice %366 {offsets = [0, 64], sizes = [2, 32], strides = [1, 1]} : vector<2x96xf32> to vector<2x32xf32>
    %379 = vector.broadcast %10 : vector<1x32xf32> to vector<2x32xf32>
    %380 = arith.addf %378, %379 : vector<2x32xf32>
    %381 = arith.mulf %375, %380 : vector<2x32xf32>
    %382 = arith.addf %377, %381 : vector<2x32xf32>
    %383 = math.tanh %382 : vector<2x32xf32>
    %cst_60 = arith.constant 1.000000e+00 : f32
    %384 = vector.broadcast %cst_60 : f32 to vector<2x32xf32>
    %385 = arith.subf %384, %376 : vector<2x32xf32>
    %386 = arith.mulf %385, %383 : vector<2x32xf32>
    %387 = arith.mulf %376, %338 : vector<2x32xf32>
    %388 = arith.addf %386, %387 : vector<2x32xf32>
    %389 = vector.extract_strided_slice %7 {offsets = [0, 0, 96], sizes = [2, 1, 96], strides = [1, 1, 1]} : vector<2x8x192xf32> to vector<2x1x96xf32>
    %390 = vector.shape_cast %389 : vector<2x1x96xf32> to vector<2x96xf32>
    %cst_61 = arith.constant dense<0.000000e+00> : vector<2x96xf32>
    %391 = tpu.matmul %363, %9, %cst_61 {dimension_numbers = #tpu.dot_dimension_numbers<[1], [0], [0], [1], [0, 0, 1, 1], [], []>} : vector<2x32xf32>, vector<32x96xf32>, vector<2x96xf32> -> vector<2x96xf32>
    %392 = vector.extract_strided_slice %390 {offsets = [0, 0], sizes = [2, 64], strides = [1, 1]} : vector<2x96xf32> to vector<2x64xf32>
    %393 = vector.extract_strided_slice %391 {offsets = [0, 0], sizes = [2, 64], strides = [1, 1]} : vector<2x96xf32> to vector<2x64xf32>
    %394 = arith.addf %392, %393 : vector<2x64xf32>
    %395 = arith.negf %394 : vector<2x64xf32>
    %396 = math.exp %395 : vector<2x64xf32>
    %cst_62 = arith.constant 1.000000e+00 : f32
    %397 = vector.broadcast %cst_62 : f32 to vector<2x64xf32>
    %398 = arith.addf %397, %396 : vector<2x64xf32>
    %399 = arith.divf %397, %398 : vector<2x64xf32>
    %400 = vector.extract_strided_slice %399 {offsets = [0, 0], sizes = [2, 32], strides = [1, 1]} : vector<2x64xf32> to vector<2x32xf32>
    %401 = vector.extract_strided_slice %399 {offsets = [0, 32], sizes = [2, 32], strides = [1, 1]} : vector<2x64xf32> to vector<2x32xf32>
    %402 = vector.extract_strided_slice %390 {offsets = [0, 64], sizes = [2, 32], strides = [1, 1]} : vector<2x96xf32> to vector<2x32xf32>
    %403 = vector.extract_strided_slice %391 {offsets = [0, 64], sizes = [2, 32], strides = [1, 1]} : vector<2x96xf32> to vector<2x32xf32>
    %404 = vector.broadcast %11 : vector<1x32xf32> to vector<2x32xf32>
    %405 = arith.addf %403, %404 : vector<2x32xf32>
    %406 = arith.mulf %400, %405 : vector<2x32xf32>
    %407 = arith.addf %402, %406 : vector<2x32xf32>
    %408 = math.tanh %407 : vector<2x32xf32>
    %cst_63 = arith.constant 1.000000e+00 : f32
    %409 = vector.broadcast %cst_63 : f32 to vector<2x32xf32>
    %410 = arith.subf %409, %401 : vector<2x32xf32>
    %411 = arith.mulf %410, %408 : vector<2x32xf32>
    %412 = arith.mulf %401, %363 : vector<2x32xf32>
    %413 = arith.addf %411, %412 : vector<2x32xf32>
    %cst_64 = arith.constant 0.000000e+00 : f32
    %414 = vector.broadcast %cst_64 : f32 to vector<2x32xf32>
    %415 = arith.maximumf %388, %414 : vector<2x32xf32>
    %cst_65 = arith.constant 0.000000e+00 : f32
    %416 = vector.broadcast %cst_65 : f32 to vector<2x32xf32>
    %417 = arith.maximumf %413, %416 : vector<2x32xf32>
    %c0_66 = arith.constant 0 : index
    %c0_67 = arith.constant 0 : index
    %418 = vector.load %arg1[%c0_66, %c0_67] : memref<2x8xf32, #tpu.memory_space<vmem>>, vector<2x8xf32>
    %c0_68 = arith.constant 0 : index
    %c0_69 = arith.constant 0 : index
    %419 = vector.load %arg12[%c0_68, %c0_69] : memref<1x8xf32, #tpu.memory_space<vmem>>, vector<1x8xf32>
    %cst_70 = arith.constant 0.000000e+00 : f32
    %420 = vector.broadcast %cst_70 : f32 to vector<2x8xf32>
    %421 = arith.cmpf oge, %418, %420 : vector<2x8xf32>
    %422 = vector.broadcast %419 : vector<1x8xf32> to vector<2x8xf32>
    %423 = arith.mulf %422, %418 : vector<2x8xf32>
    %424 = arith.select %421, %418, %423 : vector<2x8xi1>, vector<2x8xf32>
    %c0_71 = arith.constant 0 : index
    %c0_72 = arith.constant 0 : index
    %425 = vector.load %arg8[%c0_71, %c0_72] : memref<32x64xf32, #tpu.memory_space<vmem>>, vector<32x64xf32>
    %cst_73 = arith.constant dense<0.000000e+00> : vector<2x64xf32>
    %426 = tpu.matmul %415, %425, %cst_73 {dimension_numbers = #tpu.dot_dimension_numbers<[1], [0], [0], [1], [0, 0, 1, 1], [], []>} : vector<2x32xf32>, vector<32x64xf32>, vector<2x64xf32> -> vector<2x64xf32>
    %c0_74 = arith.constant 0 : index
    %c0_75 = arith.constant 0 : index
    %427 = vector.load %arg9[%c0_74, %c0_75] : memref<32x64xf32, #tpu.memory_space<vmem>>, vector<32x64xf32>
    %cst_76 = arith.constant dense<0.000000e+00> : vector<2x64xf32>
    %428 = tpu.matmul %417, %427, %cst_76 {dimension_numbers = #tpu.dot_dimension_numbers<[1], [0], [0], [1], [0, 0, 1, 1], [], []>} : vector<2x32xf32>, vector<32x64xf32>, vector<2x64xf32> -> vector<2x64xf32>
    %429 = arith.addf %426, %428 : vector<2x64xf32>
    %c0_77 = arith.constant 0 : index
    %c0_78 = arith.constant 0 : index
    %430 = vector.load %arg10[%c0_77, %c0_78] : memref<8x64xf32, #tpu.memory_space<vmem>>, vector<8x64xf32>
    %cst_79 = arith.constant dense<0.000000e+00> : vector<2x64xf32>
    %431 = tpu.matmul %424, %430, %cst_79 {dimension_numbers = #tpu.dot_dimension_numbers<[1], [0], [0], [1], [0, 0, 1, 1], [], []>} : vector<2x8xf32>, vector<8x64xf32>, vector<2x64xf32> -> vector<2x64xf32>
    %432 = arith.addf %429, %431 : vector<2x64xf32>
    %c0_80 = arith.constant 0 : index
    %c0_81 = arith.constant 0 : index
    %433 = vector.load %arg11[%c0_80, %c0_81] : memref<1x64xf32, #tpu.memory_space<vmem>>, vector<1x64xf32>
    %434 = vector.broadcast %433 : vector<1x64xf32> to vector<2x64xf32>
    %435 = arith.addf %432, %434 : vector<2x64xf32>
    %c0_82 = arith.constant 0 : index
    %c0_83 = arith.constant 0 : index
    %436 = vector.load %arg13[%c0_82, %c0_83] : memref<1x64xf32, #tpu.memory_space<vmem>>, vector<1x64xf32>
    %cst_84 = arith.constant 0.000000e+00 : f32
    %437 = vector.broadcast %cst_84 : f32 to vector<2x64xf32>
    %438 = arith.cmpf oge, %435, %437 : vector<2x64xf32>
    %439 = vector.broadcast %436 : vector<1x64xf32> to vector<2x64xf32>
    %440 = arith.mulf %439, %435 : vector<2x64xf32>
    %441 = arith.select %438, %435, %440 : vector<2x64xi1>, vector<2x64xf32>
    %c0_85 = arith.constant 0 : index
    %c0_86 = arith.constant 0 : index
    %442 = vector.load %arg14[%c0_85, %c0_86] : memref<64x32xf32, #tpu.memory_space<vmem>>, vector<64x32xf32>
    %cst_87 = arith.constant dense<0.000000e+00> : vector<2x32xf32>
    %443 = tpu.matmul %441, %442, %cst_87 {dimension_numbers = #tpu.dot_dimension_numbers<[1], [0], [0], [1], [0, 0, 1, 1], [], []>} : vector<2x64xf32>, vector<64x32xf32>, vector<2x32xf32> -> vector<2x32xf32>
    %c0_88 = arith.constant 0 : index
    %c0_89 = arith.constant 0 : index
    %444 = vector.load %arg15[%c0_88, %c0_89] : memref<1x32xf32, #tpu.memory_space<vmem>>, vector<1x32xf32>
    %445 = vector.broadcast %444 : vector<1x32xf32> to vector<2x32xf32>
    %446 = arith.addf %443, %445 : vector<2x32xf32>
    %c0_90 = arith.constant 0 : index
    %c0_91 = arith.constant 0 : index
    %447 = vector.load %arg16[%c0_90, %c0_91] : memref<1x32xf32, #tpu.memory_space<vmem>>, vector<1x32xf32>
    %cst_92 = arith.constant 0.000000e+00 : f32
    %448 = vector.broadcast %cst_92 : f32 to vector<2x32xf32>
    %449 = arith.cmpf oge, %446, %448 : vector<2x32xf32>
    %450 = vector.broadcast %447 : vector<1x32xf32> to vector<2x32xf32>
    %451 = arith.mulf %450, %446 : vector<2x32xf32>
    %452 = arith.select %449, %446, %451 : vector<2x32xi1>, vector<2x32xf32>
    %c0_93 = arith.constant 0 : index
    %c0_94 = arith.constant 0 : index
    %453 = vector.load %arg17[%c0_93, %c0_94] : memref<32x1xf32, #tpu.memory_space<vmem>>, vector<32x1xf32>
    %cst_95 = arith.constant dense<0.000000e+00> : vector<2x1xf32>
    %454 = tpu.matmul %452, %453, %cst_95 {dimension_numbers = #tpu.dot_dimension_numbers<[1], [0], [0], [1], [0, 0, 1, 1], [], []>} : vector<2x32xf32>, vector<32x1xf32>, vector<2x1xf32> -> vector<2x1xf32>
    %c0_96 = arith.constant 0 : index
    %c0_97 = arith.constant 0 : index
    %455 = vector.load %arg18[%c0_96, %c0_97] : memref<1x1xf32, #tpu.memory_space<vmem>>, vector<1x1xf32>
    %456 = vector.broadcast %455 : vector<1x1xf32> to vector<2x1xf32>
    %457 = arith.addf %454, %456 : vector<2x1xf32>
    %cst_98 = arith.constant 0.000000e+00 : f32
    %458 = vector.broadcast %cst_98 : f32 to vector<2x1xf32>
    %459 = arith.maximumf %457, %458 : vector<2x1xf32>
    %c0_99 = arith.constant 0 : index
    %c0_100 = arith.constant 0 : index
    %460 = vector.load %arg19[%c0_99, %c0_100] : memref<2x1xf32, #tpu.memory_space<vmem>>, vector<2x1xf32>
    tpu.vector_store %arg19[%c0_99, %c0_100], %459 {strides = array<i32>} : memref<2x1xf32, #tpu.memory_space<vmem>>, vector<2x1xf32>,
    return
  }
}

</mosaic_0001>

<llo_original>
// kernel: rnn_forward.1
$region0: #{rnn_forward.1}
  #allocation0 [shape = 'u32[]', space=smem, size = 0x4, offset = 0x4, fixed_abs, tag = 'smem constant byte address 0x4 - core index']
  #allocation1 [shape = 'u32[72,128]{1,0:T(1,128)}', space=vmem, size = 0x9000, scoped, tag = 'internal scratch']
  #allocation2 [shape = 'f32[1,1]{1,0:T(1,128)S(1)}', space=vmem, size = 0x200, scoped, tag = 'scoped memory for rnn_forward.1']
  %s0 = inlined_call_operand.vmem [shape: f32[2,8,16], index: 0, kind: input, shape index: {}]
  %s1 = inlined_call_operand.vmem [shape: f32[2,8], index: 1, kind: input, shape index: {}]
  %s2 = inlined_call_operand.vmem [shape: f32[16,192], index: 2, kind: input, shape index: {}]
  %s3 = inlined_call_operand.vmem [shape: f32[1,192], index: 3, kind: input, shape index: {}]
  %s4 = inlined_call_operand.vmem [shape: f32[32,96], index: 4, kind: input, shape index: {}]
  %s5 = inlined_call_operand.vmem [shape: f32[32,96], index: 5, kind: input, shape index: {}]
  %s6 = inlined_call_operand.vmem [shape: f32[1,32], index: 6, kind: input, shape index: {}]
  %s7 = inlined_call_operand.vmem [shape: f32[1,32], index: 7, kind: input, shape index: {}]
  %s8 = inlined_call_operand.vmem [shape: f32[32,64], index: 8, kind: input, shape index: {}]
  %s9 = inlined_call_operand.vmem [shape: f32[32,64], index: 9, kind: input, shape index: {}]
  %s10 = inlined_call_operand.vmem [shape: f32[8,64], index: 10, kind: input, shape index: {}]
  %s11 = inlined_call_operand.vmem [shape: f32[1,64], index: 11, kind: input, shape index: {}]
  %s12 = inlined_call_operand.vmem [shape: f32[1,8], index: 12, kind: input, shape index: {}]
  %s13 = inlined_call_operand.vmem [shape: f32[1,64], index: 13, kind: input, shape index: {}]
  %s14 = inlined_call_operand.vmem [shape: f32[64,32], index: 14, kind: input, shape index: {}]
  %s15 = inlined_call_operand.vmem [shape: f32[1,32], index: 15, kind: input, shape index: {}]
  %s16 = inlined_call_operand.vmem [shape: f32[1,32], index: 16, kind: input, shape index: {}]
  %s17 = inlined_call_operand.vmem [shape: f32[32,1], index: 17, kind: input, shape index: {}]
  %s18 = inlined_call_operand.<no memory space> [shape: f32[1,1], index: 18, kind: input, shape index: {}]
  %s19 = inlined_call_operand.vmem [shape: f32[2,1], index: 19, kind: output, shape index: {}]
  %s20 = sld [smem:[#allocation0]]
  $region86: #{rnn_forward.1} parent=0
    _
  %s22 = ssub.s32 1, %s20
  %s23 = scalar_select 0, %s22, %s20
  %v24 = vstv %s18
  %25 = vst [vmem:[#allocation2] sm:$0x1] %v24
  // Predicated region
  $region2: #{rnn_forward.1} parent=0 // pred_check
    _
  $region3: #{rnn_forward.1} parent=0 // pred_check_branch
    %27 = sbr.rel (0) target = $region5
  $region4: #{rnn_forward.1} parent=0 // pred_region
    _
  $region5: #{rnn_forward.1} parent=0 // pred_fallthru
    _
  // Predicated region
  $region6: #{rnn_forward.1} parent=0 // pred_check
    _
  $region7: #{rnn_forward.1} parent=0 // pred_check_branch
    %29 = sbr.rel (0) target = $region9
  $region8: #{rnn_forward.1} parent=0 // pred_region
    _
  $region9: #{rnn_forward.1} parent=0 // pred_fallthru
    _
  // Predicated region
  $region10: #{rnn_forward.1} parent=0 // pred_check
    _
  $region11: #{rnn_forward.1} parent=0 // pred_check_branch
    %31 = sbr.rel (0) target = $region13
  $region12: #{rnn_forward.1} parent=0 // pred_region
    _
  $region13: #{rnn_forward.1} parent=0 // pred_fallthru
    _
  // Predicated region
  $region14: #{rnn_forward.1} parent=0 // pred_check
    _
  $region15: #{rnn_forward.1} parent=0 // pred_check_branch
    %33 = sbr.rel (0) target = $region17
  $region16: #{rnn_forward.1} parent=0 // pred_region
    _
  $region17: #{rnn_forward.1} parent=0 // pred_fallthru
    _
  // Predicated region
  $region18: #{rnn_forward.1} parent=0 // pred_check
    _
  $region19: #{rnn_forward.1} parent=0 // pred_check_branch
    %35 = sbr.rel (0) target = $region21
  $region20: #{rnn_forward.1} parent=0 // pred_region
    _
  $region21: #{rnn_forward.1} parent=0 // pred_fallthru
    _
  // Predicated region
  $region22: #{rnn_forward.1} parent=0 // pred_check
    _
  $region23: #{rnn_forward.1} parent=0 // pred_check_branch
    %37 = sbr.rel (0) target = $region25
  $region24: #{rnn_forward.1} parent=0 // pred_region
    _
  $region25: #{rnn_forward.1} parent=0 // pred_fallthru
    _
  // Predicated region
  $region26: #{rnn_forward.1} parent=0 // pred_check
    _
  $region27: #{rnn_forward.1} parent=0 // pred_check_branch
    %39 = sbr.rel (0) target = $region29
  $region28: #{rnn_forward.1} parent=0 // pred_region
    _
  $region29: #{rnn_forward.1} parent=0 // pred_fallthru
    _
  // Predicated region
  $region30: #{rnn_forward.1} parent=0 // pred_check
    _
  $region31: #{rnn_forward.1} parent=0 // pred_check_branch
    %41 = sbr.rel (0) target = $region33
  $region32: #{rnn_forward.1} parent=0 // pred_region
    _
  $region33: #{rnn_forward.1} parent=0 // pred_fallthru
    _
  // Predicated region
  $region34: #{rnn_forward.1} parent=0 // pred_check
    _
  $region35: #{rnn_forward.1} parent=0 // pred_check_branch
    %43 = sbr.rel (0) target = $region37
  $region36: #{rnn_forward.1} parent=0 // pred_region
    _
  $region37: #{rnn_forward.1} parent=0 // pred_fallthru
    _
  // Predicated region
  $region38: #{rnn_forward.1} parent=0 // pred_check
    _
  $region39: #{rnn_forward.1} parent=0 // pred_check_branch
    %45 = sbr.rel (0) target = $region41
  $region40: #{rnn_forward.1} parent=0 // pred_region
    _
  $region41: #{rnn_forward.1} parent=0 // pred_fallthru
    _
  // Predicated region
  $region42: #{rnn_forward.1} parent=0 // pred_check
    _
  $region43: #{rnn_forward.1} parent=0 // pred_check_branch
    %47 = sbr.rel (0) target = $region45
  $region44: #{rnn_forward.1} parent=0 // pred_region
    _
  $region45: #{rnn_forward.1} parent=0 // pred_fallthru
    _
  // Predicated region
  $region46: #{rnn_forward.1} parent=0 // pred_check
    _
  $region47: #{rnn_forward.1} parent=0 // pred_check_branch
    %49 = sbr.rel (0) target = $region49
  $region48: #{rnn_forward.1} parent=0 // pred_region
    _
  $region49: #{rnn_forward.1} parent=0 // pred_fallthru
    _
  // Predicated region
  $region50: #{rnn_forward.1} parent=0 // pred_check
    _
  $region51: #{rnn_forward.1} parent=0 // pred_check_branch
    %51 = sbr.rel (0) target = $region53
  $region52: #{rnn_forward.1} parent=0 // pred_region
    _
  $region53: #{rnn_forward.1} parent=0 // pred_fallthru
    _
  // Predicated region
  $region54: #{rnn_forward.1} parent=0 // pred_check
    _
  $region55: #{rnn_forward.1} parent=0 // pred_check_branch
    %53 = sbr.rel (0) target = $region57
  $region56: #{rnn_forward.1} parent=0 // pred_region
    _
  $region57: #{rnn_forward.1} parent=0 // pred_fallthru
    _
  // Predicated region
  $region58: #{rnn_forward.1} parent=0 // pred_check
    _
  $region59: #{rnn_forward.1} parent=0 // pred_check_branch
    %55 = sbr.rel (0) target = $region61
  $region60: #{rnn_forward.1} parent=0 // pred_region
    _
  $region61: #{rnn_forward.1} parent=0 // pred_fallthru
    _
  // Predicated region
  $region62: #{rnn_forward.1} parent=0 // pred_check
    _
  $region63: #{rnn_forward.1} parent=0 // pred_check_branch
    %57 = sbr.rel (0) target = $region65
  $region64: #{rnn_forward.1} parent=0 // pred_region
    _
  $region65: #{rnn_forward.1} parent=0 // pred_fallthru
    _
  // Predicated region
  $region66: #{rnn_forward.1} parent=0 // pred_check
    _
  $region67: #{rnn_forward.1} parent=0 // pred_check_branch
    %59 = sbr.rel (0) target = $region69
  $region68: #{rnn_forward.1} parent=0 // pred_region
    _
  $region69: #{rnn_forward.1} parent=0 // pred_fallthru
    _
  // Predicated region
  $region70: #{rnn_forward.1} parent=0 // pred_check
    _
  $region71: #{rnn_forward.1} parent=0 // pred_check_branch
    %61 = sbr.rel (0) target = $region73
  $region72: #{rnn_forward.1} parent=0 // pred_region
    _
  $region73: #{rnn_forward.1} parent=0 // pred_fallthru
    _
  // Predicated region
  $region74: #{rnn_forward.1} parent=0 // pred_check
    _
  $region75: #{rnn_forward.1} parent=0 // pred_check_branch
    %63 = sbr.rel (0) target = $region77
  $region76: #{rnn_forward.1} parent=0 // pred_region
    _
  $region77: #{rnn_forward.1} parent=0 // pred_fallthru
    _
  %v64 = vld [vmem:[%s0] sm:$0xff]
  %v65 = vld [vmem:[%s0 + $0x8] sm:$0xff]
  %v66 = vld [vmem:[%s2] sm:$0xff]
  %v67 = vld [vmem:[%s2 + $0x8] sm:$0xff]
  %v68 = vld [vmem:[%s2 + $0x10] sm:$0xff]
  %v69 = vld [vmem:[%s2 + $0x18] sm:$0xff]
  %v70 = vld [vmem:[%s3] sm:$0x3]
  %v72 = vperm.slane %v70, 0
  %v73 = vperm.slane %v70, 1
  %vm76 = vcmask 130048
  %v78 = vsel %vm76, %v64, 0
  %v81 = vsel %vm76, %v65, 0
  %83 = vmatpush.msra.mxu0 0.0
  %84 = vmatpush.msra.mxu0 0.0
  %85 = vmatpush.msra.mxu0 0.0
  %86 = vmatpush.msra.mxu0 0.0
  %87 = vmatpush.msra.mxu0 0.0
  %88 = vmatpush.msra.mxu0 0.0
  %89 = vmatpush.msra.mxu0 0.0
  %90 = vmatpush.msra.mxu0 0.0
  %91 = vmatpush.msra.mxu0 0.0
  %92 = vmatpush.msra.mxu0 0.0
  %93 = vmatpush.msra.mxu0 0.0
  %94 = vmatpush.msra.mxu0 0.0
  %95 = vmatpush.msra.mxu0 0.0
  %96 = vmatpush.msra.mxu0 0.0
  %97 = vmatpush.msra.mxu0 %v68
  %98 = vmatpush.msra.mxu0 %v66
  %99 = vmatmul.f32.gmra.mxu0 %v78
  %v100 = vpop.f32.mrf.mxu0
  %v101 = vadd.f32 %v72, %v100
  %102 = vmatmul.f32.gmra.mxu0 %v81
  %v103 = vpop.f32.mrf.mxu0
  %v104 = vadd.f32 %v72, %v103
  %105 = vdwg.mxu0
  %106 = vmatpush.msra.mxu0 0.0
  %107 = vmatpush.msra.mxu0 0.0
  %108 = vmatpush.msra.mxu0 0.0
  %109 = vmatpush.msra.mxu0 0.0
  %110 = vmatpush.msra.mxu0 0.0
  %111 = vmatpush.msra.mxu0 0.0
  %112 = vmatpush.msra.mxu0 0.0
  %113 = vmatpush.msra.mxu0 0.0
  %114 = vmatpush.msra.mxu0 0.0
  %115 = vmatpush.msra.mxu0 0.0
  %116 = vmatpush.msra.mxu0 0.0
  %117 = vmatpush.msra.mxu0 0.0
  %118 = vmatpush.msra.mxu0 0.0
  %119 = vmatpush.msra.mxu0 0.0
  %120 = vmatpush.msra.mxu0 %v69
  %121 = vmatpush.msra.mxu0 %v67
  %122 = vmatmul.f32.gmra.mxu0 %v78
  %v123 = vpop.f32.mrf.mxu0
  %v124 = vadd.f32 %v73, %v123
  %125 = vmatmul.f32.gmra.mxu0 %v81
  %v126 = vpop.f32.mrf.mxu0
  %v127 = vadd.f32 %v73, %v126
  %128 = vdwg.mxu0
  %v129 = vld [vmem:[%s4] sm:$0xff]
  %v130 = vld [vmem:[%s4 + $0x8] sm:$0xff]
  %v131 = vld [vmem:[%s4 + $0x10] sm:$0xff]
  %v132 = vld [vmem:[%s4 + $0x18] sm:$0xff]
  %v133 = vld [vmem:[%s5] sm:$0xff]
  %v134 = vld [vmem:[%s5 + $0x8] sm:$0xff]
  %v135 = vld [vmem:[%s5 + $0x10] sm:$0xff]
  %v136 = vld [vmem:[%s5 + $0x18] sm:$0xff]
  %v137 = vld [vmem:[%s6] sm:$0x1]
  %v138 = vld [vmem:[%s7] sm:$0x1]
  %vm139 = vcmask 261120
  %v141 = vsel %vm139, 0.0, 0
  %143 = vmatpush.msra.mxu0 0.0
  %144 = vmatpush.msra.mxu0 0.0
  %145 = vmatpush.msra.mxu0 0.0
  %146 = vmatpush.msra.mxu0 0.0
  %147 = vmatpush.msra.mxu0 0.0
  %148 = vmatpush.msra.mxu0 0.0
  %149 = vmatpush.msra.mxu0 0.0
  %150 = vmatpush.msra.mxu0 0.0
  %151 = vmatpush.msra.mxu0 0.0
  %152 = vmatpush.msra.mxu0 0.0
  %153 = vmatpush.msra.mxu0 0.0
  %154 = vmatpush.msra.mxu0 0.0
  %155 = vmatpush.msra.mxu0 %v132
  %156 = vmatpush.msra.mxu0 %v131
  %157 = vmatpush.msra.mxu0 %v130
  %158 = vmatpush.msra.mxu0 %v129
  %159 = vmatmul.f32.gmra.mxu0 %v141
  %v160 = vpop.f32.mrf.mxu0
  %v161 = vadd.f32 0.0, %v160
  %162 = vdwg.mxu0
  %v164 = vrot.slane %v161, 1
  %v167 = vadd.f32 %v101, %v161
  %v168 = vadd.f32 %v104, %v164
  %v169 = vxor.u32 %v167, 2147483648
  %v170 = vxor.u32 %v168, 2147483648
  %v171 = vmul.f32 %v169, 1.442695
  %v172 = vpow.pop %v171
  %v173 = vmul.f32 %v170, 1.442695
  %v174 = vpow.pop %v173
  %v175 = vadd.f32 %v172, 1.0
  %v176 = vadd.f32 %v174, 1.0
  %v177 = vrcp.pop %v175
  %v178 = vmul.f32 %v175, %v177
  %v179 = vsub.f32 1.0, %v178
  %v180 = vmul.f32 %v177, %v179
  %v181 = vadd.f32 %v177, %v180
  %vm182 = vweird.f32 %v175
  %vm183 = vweird.f32 %v177
  %vm184 = vmor %vm182, %vm183
  %v185 = vsel %vm184, %v177, %v181
  %v186 = vand.u32 2147483647, %v175
  %vm187 = vcmp.eq.f32.partialorder %v186, 8.507059e+37
  %v188 = vand.u32 %v175, 2147483648
  %v189 = vor.u32 1.1754944e-38, %v188
  %v190 = vsel %vm187, %v189, %v185
  %v191 = vmul.f32 1.0, %v190
  %v192 = vrcp.pop %v176
  %v193 = vmul.f32 %v176, %v192
  %v194 = vsub.f32 1.0, %v193
  %v195 = vmul.f32 %v192, %v194
  %v196 = vadd.f32 %v192, %v195
  %vm197 = vweird.f32 %v176
  %vm198 = vweird.f32 %v192
  %vm199 = vmor %vm197, %vm198
  %v200 = vsel %vm199, %v192, %v196
  %v201 = vand.u32 2147483647, %v176
  %vm202 = vcmp.eq.f32.partialorder %v201, 8.507059e+37
  %v203 = vand.u32 %v176, 2147483648
  %v204 = vor.u32 1.1754944e-38, %v203
  %v205 = vsel %vm202, %v204, %v200
  %v206 = vmul.f32 1.0, %v205
  %v208 = vperm.slane %v137, 0
  %209 = vrot.lane.b32.xlu0 %v208, 64
  %v210 = vpop.permute.xlu0 %209
  %v212 = vadd.f32 %v161, %v210
  %v214 = vrot.slane %v212, 1
  %215 = vrot.lane.b32.xlu0 %v212, 64
  %v216 = vpop.permute.xlu0 %215
  %217 = vrot.lane.b32.xlu0 %v214, 64
  %v218 = vpop.permute.xlu0 %217
  %v221 = vmul.f32 %v191, %v216
  %v222 = vmul.f32 %v206, %v218
  %225 = vrot.lane.b32.xlu0 %v221, 64
  %v226 = vpop.permute.xlu0 %225
  %227 = vrot.lane.b32.xlu0 %v222, 64
  %v228 = vpop.permute.xlu0 %227
  %v231 = vadd.f32 %v101, %v226
  %v232 = vadd.f32 %v104, %v228
  %v233 = vtanh.pop %v231
  %v234 = vtanh.pop %v232
  %v235 = vsub.f32 1.0, %v191
  %v236 = vsub.f32 1.0, %v206
  %239 = vrot.lane.b32.xlu0 %v233, 96
  %v240 = vpop.permute.xlu0 %239
  %241 = vrot.lane.b32.xlu0 %v234, 96
  %v242 = vpop.permute.xlu0 %241
  %v245 = vmul.f32 %v235, %v240
  %v246 = vmul.f32 %v236, %v242
  %v247 = vmul.f32 %v191, 0.0
  %v248 = vmul.f32 %v206, 0.0
  %v249 = vadd.f32 %v245, %v247
  %v250 = vadd.f32 %v246, %v248
  %251 = vmatpush.msra.mxu0 0.0
  %252 = vmatpush.msra.mxu0 0.0
  %253 = vmatpush.msra.mxu0 0.0
  %254 = vmatpush.msra.mxu0 0.0
  %255 = vmatpush.msra.mxu0 0.0
  %256 = vmatpush.msra.mxu0 0.0
  %257 = vmatpush.msra.mxu0 0.0
  %258 = vmatpush.msra.mxu0 0.0
  %259 = vmatpush.msra.mxu0 0.0
  %260 = vmatpush.msra.mxu0 0.0
  %261 = vmatpush.msra.mxu0 0.0
  %262 = vmatpush.msra.mxu0 0.0
  %263 = vmatpush.msra.mxu0 %v136
  %264 = vmatpush.msra.mxu0 %v135
  %265 = vmatpush.msra.mxu0 %v134
  %266 = vmatpush.msra.mxu0 %v133
  %267 = vmatmul.f32.gmra.mxu0 %v141
  %v268 = vpop.f32.mrf.mxu0
  %v269 = vadd.f32 0.0, %v268
  %270 = vdwg.mxu0
  %v272 = vrot.slane %v269, 1
  %v273 = vrot.slane %v269, 2
  %274 = vrot.lane.b32.xlu0 %v272, 96
  %v275 = vpop.permute.xlu0 %274
  %276 = vrot.lane.b32.xlu0 %v273, 96
  %v277 = vpop.permute.xlu0 %276
  %v280 = vadd.f32 %v101, %v275
  %v281 = vadd.f32 %v124, %v275
  %v282 = vadd.f32 %v104, %v277
  %v283 = vadd.f32 %v127, %v277
  %v284 = vxor.u32 %v280, 2147483648
  %v285 = vxor.u32 %v281, 2147483648
  %v286 = vxor.u32 %v282, 2147483648
  %v287 = vxor.u32 %v283, 2147483648
  %v288 = vmul.f32 %v284, 1.442695
  %v289 = vpow.pop %v288
  %v290 = vmul.f32 %v285, 1.442695
  %v291 = vpow.pop %v290
  %v292 = vmul.f32 %v286, 1.442695
  %v293 = vpow.pop %v292
  %v294 = vmul.f32 %v287, 1.442695
  %v295 = vpow.pop %v294
  %v296 = vadd.f32 %v289, 1.0
  %v297 = vadd.f32 %v291, 1.0
  %v298 = vadd.f32 %v293, 1.0
  %v299 = vadd.f32 %v295, 1.0
  %v300 = vrcp.pop %v296
  %v301 = vmul.f32 %v296, %v300
  %v302 = vsub.f32 1.0, %v301
  %v303 = vmul.f32 %v300, %v302
  %v304 = vadd.f32 %v300, %v303
  %vm305 = vweird.f32 %v296
  %vm306 = vweird.f32 %v300
  %vm307 = vmor %vm305, %vm306
  %v308 = vsel %vm307, %v300, %v304
  %v309 = vand.u32 2147483647, %v296
  %vm310 = vcmp.eq.f32.partialorder %v309, 8.507059e+37
  %v311 = vand.u32 %v296, 2147483648
  %v312 = vor.u32 1.1754944e-38, %v311
  %v313 = vsel %vm310, %v312, %v308
  %v314 = vmul.f32 1.0, %v313
  %v315 = vrcp.pop %v297
  %v316 = vmul.f32 %v297, %v315
  %v317 = vsub.f32 1.0, %v316
  %v318 = vmul.f32 %v315, %v317
  %v319 = vadd.f32 %v315, %v318
  %vm320 = vweird.f32 %v297
  %vm321 = vweird.f32 %v315
  %vm322 = vmor %vm320, %vm321
  %v323 = vsel %vm322, %v315, %v319
  %v324 = vand.u32 2147483647, %v297
  %vm325 = vcmp.eq.f32.partialorder %v324, 8.507059e+37
  %v326 = vand.u32 %v297, 2147483648
  %v327 = vor.u32 1.1754944e-38, %v326
  %v328 = vsel %vm325, %v327, %v323
  %v329 = vmul.f32 1.0, %v328
  %v330 = vrcp.pop %v298
  %v331 = vmul.f32 %v298, %v330
  %v332 = vsub.f32 1.0, %v331
  %v333 = vmul.f32 %v330, %v332
  %v334 = vadd.f32 %v330, %v333
  %vm335 = vweird.f32 %v298
  %vm336 = vweird.f32 %v330
  %vm337 = vmor %vm335, %vm336
  %v338 = vsel %vm337, %v330, %v334
  %v339 = vand.u32 2147483647, %v298
  %vm340 = vcmp.eq.f32.partialorder %v339, 8.507059e+37
  %v341 = vand.u32 %v298, 2147483648
  %v342 = vor.u32 1.1754944e-38, %v341
  %v343 = vsel %vm340, %v342, %v338
  %v344 = vmul.f32 1.0, %v343
  %v345 = vrcp.pop %v299
  %v346 = vmul.f32 %v299, %v345
  %v347 = vsub.f32 1.0, %v346
  %v348 = vmul.f32 %v345, %v347
  %v349 = vadd.f32 %v345, %v348
  %vm350 = vweird.f32 %v299
  %vm351 = vweird.f32 %v345
  %vm352 = vmor %vm350, %vm351
  %v353 = vsel %vm352, %v345, %v349
  %v354 = vand.u32 2147483647, %v299
  %vm355 = vcmp.eq.f32.partialorder %v354, 8.507059e+37
  %v356 = vand.u32 %v299, 2147483648
  %v357 = vor.u32 1.1754944e-38, %v356
  %v358 = vsel %vm355, %v357, %v353
  %v359 = vmul.f32 1.0, %v358
  %v361 = vperm.slane %v138, 0
  %362 = vrot.lane.b32.xlu0 %v361, 64
  %v363 = vpop.permute.xlu0 %362
  %v365 = vadd.f32 %v269, %v363
  %v367 = vrot.slane %v365, 1
  %v368 = vrot.slane %v365, 2
  %369 = vrot.lane.b32.xlu0 %v367, 32
  %v370 = vpop.permute.xlu0 %369
  %371 = vrot.lane.b32.xlu0 %v368, 32
  %v372 = vpop.permute.xlu0 %371
  %v375 = vmul.f32 %v314, %v370
  %v376 = vmul.f32 %v344, %v372
  %379 = vrot.lane.b32.xlu0 %v375, 64
  %v380 = vpop.permute.xlu0 %379
  %381 = vrot.lane.b32.xlu0 %v376, 64
  %v382 = vpop.permute.xlu0 %381
  %v385 = vadd.f32 %v124, %v380
  %v386 = vadd.f32 %v127, %v382
  %v387 = vtanh.pop %v385
  %v388 = vtanh.pop %v386
  %v389 = vsub.f32 1.0, %v329
  %v390 = vsub.f32 1.0, %v359
  %393 = vrot.lane.b32.xlu0 %v387, 96
  %v394 = vpop.permute.xlu0 %393
  %395 = vrot.lane.b32.xlu0 %v388, 96
  %v396 = vpop.permute.xlu0 %395
  %v399 = vmul.f32 %v389, %v394
  %v400 = vmul.f32 %v390, %v396
  %v401 = vmul.f32 %v329, 0.0
  %v402 = vmul.f32 %v359, 0.0
  %v403 = vadd.f32 %v399, %v401
  %v404 = vadd.f32 %v400, %v402
  %v407 = vrot.slane %v250, 7
  %vm408 = vcmask 1041409
  %v409 = vsel %vm408, %v407, %v249
  %410 = vrot.lane.b32.xlu0 %v409, 96
  %v411 = vpop.permute.xlu0 %410
  %v412 = vsel %vm139, %v411, 0
  %414 = vmatpush.msra.mxu0 0.0
  %415 = vmatpush.msra.mxu0 0.0
  %416 = vmatpush.msra.mxu0 0.0
  %417 = vmatpush.msra.mxu0 0.0
  %418 = vmatpush.msra.mxu0 0.0
  %419 = vmatpush.msra.mxu0 0.0
  %420 = vmatpush.msra.mxu0 0.0
  %421 = vmatpush.msra.mxu0 0.0
  %422 = vmatpush.msra.mxu0 0.0
  %423 = vmatpush.msra.mxu0 0.0
  %424 = vmatpush.msra.mxu0 0.0
  %425 = vmatpush.msra.mxu0 0.0
  %426 = vmatpush.msra.mxu0 %v132
  %427 = vmatpush.msra.mxu0 %v131
  %428 = vmatpush.msra.mxu0 %v130
  %429 = vmatpush.msra.mxu0 %v129
  %430 = vmatmul.f32.gmra.mxu0 %v412
  %v431 = vpop.f32.mrf.mxu0
  %v432 = vadd.f32 0.0, %v431
  %433 = vdwg.mxu0
  %v435 = vrot.slane %v432, 7
  %v438 = vadd.f32 %v101, %v435
  %v439 = vadd.f32 %v104, %v432
  %v440 = vxor.u32 %v438, 2147483648
  %v441 = vxor.u32 %v439, 2147483648
  %v442 = vmul.f32 %v440, 1.442695
  %v443 = vpow.pop %v442
  %v444 = vmul.f32 %v441, 1.442695
  %v445 = vpow.pop %v444
  %v446 = vadd.f32 %v443, 1.0
  %v447 = vadd.f32 %v445, 1.0
  %v448 = vrcp.pop %v446
  %v449 = vmul.f32 %v446, %v448
  %v450 = vsub.f32 1.0, %v449
  %v451 = vmul.f32 %v448, %v450
  %v452 = vadd.f32 %v448, %v451
  %vm453 = vweird.f32 %v446
  %vm454 = vweird.f32 %v448
  %vm455 = vmor %vm453, %vm454
  %v456 = vsel %vm455, %v448, %v452
  %v457 = vand.u32 2147483647, %v446
  %vm458 = vcmp.eq.f32.partialorder %v457, 8.507059e+37
  %v459 = vand.u32 %v446, 2147483648
  %v460 = vor.u32 1.1754944e-38, %v459
  %v461 = vsel %vm458, %v460, %v456
  %v462 = vmul.f32 1.0, %v461
  %v463 = vrcp.pop %v447
  %v464 = vmul.f32 %v447, %v463
  %v465 = vsub.f32 1.0, %v464
  %v466 = vmul.f32 %v463, %v465
  %v467 = vadd.f32 %v463, %v466
  %vm468 = vweird.f32 %v447
  %vm469 = vweird.f32 %v463
  %vm470 = vmor %vm468, %vm469
  %v471 = vsel %vm470, %v463, %v467
  %v472 = vand.u32 2147483647, %v447
  %vm473 = vcmp.eq.f32.partialorder %v472, 8.507059e+37
  %v474 = vand.u32 %v447, 2147483648
  %v475 = vor.u32 1.1754944e-38, %v474
  %v476 = vsel %vm473, %v475, %v471
  %v477 = vmul.f32 1.0, %v476
  %v478 = vadd.f32 %v432, %v210
  %v480 = vrot.slane %v478, 7
  %481 = vrot.lane.b32.xlu0 %v480, 64
  %v482 = vpop.permute.xlu0 %481
  %483 = vrot.lane.b32.xlu0 %v478, 64
  %v484 = vpop.permute.xlu0 %483
  %v487 = vmul.f32 %v462, %v482
  %v488 = vmul.f32 %v477, %v484
  %491 = vrot.lane.b32.xlu0 %v487, 64
  %v492 = vpop.permute.xlu0 %491
  %493 = vrot.lane.b32.xlu0 %v488, 64
  %v494 = vpop.permute.xlu0 %493
  %v497 = vadd.f32 %v101, %v492
  %v498 = vadd.f32 %v104, %v494
  %v499 = vtanh.pop %v497
  %v500 = vtanh.pop %v498
  %v501 = vsub.f32 1.0, %v462
  %v502 = vsub.f32 1.0, %v477
  %505 = vrot.lane.b32.xlu0 %v499, 96
  %v506 = vpop.permute.xlu0 %505
  %507 = vrot.lane.b32.xlu0 %v500, 96
  %v508 = vpop.permute.xlu0 %507
  %v511 = vmul.f32 %v501, %v506
  %v512 = vmul.f32 %v502, %v508
  %v513 = vrot.slane %v249, 7
  %v516 = vmul.f32 %v462, %v513
  %v517 = vmul.f32 %v477, %v407
  %v518 = vadd.f32 %v511, %v516
  %v519 = vadd.f32 %v512, %v517
  %v522 = vrot.slane %v403, 7
  %v523 = vrot.slane %v404, 6
  %v524 = vsel %vm408, %v523, %v522
  %v525 = vsel %vm139, %v524, 0
  %527 = vmatpush.msra.mxu0 0.0
  %528 = vmatpush.msra.mxu0 0.0
  %529 = vmatpush.msra.mxu0 0.0
  %530 = vmatpush.msra.mxu0 0.0
  %531 = vmatpush.msra.mxu0 0.0
  %532 = vmatpush.msra.mxu0 0.0
  %533 = vmatpush.msra.mxu0 0.0
  %534 = vmatpush.msra.mxu0 0.0
  %535 = vmatpush.msra.mxu0 0.0
  %536 = vmatpush.msra.mxu0 0.0
  %537 = vmatpush.msra.mxu0 0.0
  %538 = vmatpush.msra.mxu0 0.0
  %539 = vmatpush.msra.mxu0 %v136
  %540 = vmatpush.msra.mxu0 %v135
  %541 = vmatpush.msra.mxu0 %v134
  %542 = vmatpush.msra.mxu0 %v133
  %543 = vmatmul.f32.gmra.mxu0 %v525
  %v544 = vpop.f32.mrf.mxu0
  %v545 = vadd.f32 0.0, %v544
  %546 = vdwg.mxu0
  %v548 = vrot.slane %v545, 2
  %v549 = vrot.slane %v545, 3
  %550 = vrot.lane.b32.xlu0 %v548, 96
  %v551 = vpop.permute.xlu0 %550
  %552 = vrot.lane.b32.xlu0 %v549, 96
  %v553 = vpop.permute.xlu0 %552
  %v556 = vadd.f32 %v101, %v551
  %v557 = vadd.f32 %v124, %v551
  %v558 = vadd.f32 %v104, %v553
  %v559 = vadd.f32 %v127, %v553
  %v560 = vxor.u32 %v556, 2147483648
  %v561 = vxor.u32 %v557, 2147483648
  %v562 = vxor.u32 %v558, 2147483648
  %v563 = vxor.u32 %v559, 2147483648
  %v564 = vmul.f32 %v560, 1.442695
  %v565 = vpow.pop %v564
  %v566 = vmul.f32 %v561, 1.442695
  %v567 = vpow.pop %v566
  %v568 = vmul.f32 %v562, 1.442695
  %v569 = vpow.pop %v568
  %v570 = vmul.f32 %v563, 1.442695
  %v571 = vpow.pop %v570
  %v572 = vadd.f32 %v565, 1.0
  %v573 = vadd.f32 %v567, 1.0
  %v574 = vadd.f32 %v569, 1.0
  %v575 = vadd.f32 %v571, 1.0
  %v576 = vrcp.pop %v572
  %v577 = vmul.f32 %v572, %v576
  %v578 = vsub.f32 1.0, %v577
  %v579 = vmul.f32 %v576, %v578
  %v580 = vadd.f32 %v576, %v579
  %vm581 = vweird.f32 %v572
  %vm582 = vweird.f32 %v576
  %vm583 = vmor %vm581, %vm582
  %v584 = vsel %vm583, %v576, %v580
  %v585 = vand.u32 2147483647, %v572
  %vm586 = vcmp.eq.f32.partialorder %v585, 8.507059e+37
  %v587 = vand.u32 %v572, 2147483648
  %v588 = vor.u32 1.1754944e-38, %v587
  %v589 = vsel %vm586, %v588, %v584
  %v590 = vmul.f32 1.0, %v589
  %v591 = vrcp.pop %v573
  %v592 = vmul.f32 %v573, %v591
  %v593 = vsub.f32 1.0, %v592
  %v594 = vmul.f32 %v591, %v593
  %v595 = vadd.f32 %v591, %v594
  %vm596 = vweird.f32 %v573
  %vm597 = vweird.f32 %v591
  %vm598 = vmor %vm596, %vm597
  %v599 = vsel %vm598, %v591, %v595
  %v600 = vand.u32 2147483647, %v573
  %vm601 = vcmp.eq.f32.partialorder %v600, 8.507059e+37
  %v602 = vand.u32 %v573, 2147483648
  %v603 = vor.u32 1.1754944e-38, %v602
  %v604 = vsel %vm601, %v603, %v599
  %v605 = vmul.f32 1.0, %v604
  %v606 = vrcp.pop %v574
  %v607 = vmul.f32 %v574, %v606
  %v608 = vsub.f32 1.0, %v607
  %v609 = vmul.f32 %v606, %v608
  %v610 = vadd.f32 %v606, %v609
  %vm611 = vweird.f32 %v574
  %vm612 = vweird.f32 %v606
  %vm613 = vmor %vm611, %vm612
  %v614 = vsel %vm613, %v606, %v610
  %v615 = vand.u32 2147483647, %v574
  %vm616 = vcmp.eq.f32.partialorder %v615, 8.507059e+37
  %v617 = vand.u32 %v574, 2147483648
  %v618 = vor.u32 1.1754944e-38, %v617
  %v619 = vsel %vm616, %v618, %v614
  %v620 = vmul.f32 1.0, %v619
  %v621 = vrcp.pop %v575
  %v622 = vmul.f32 %v575, %v621
  %v623 = vsub.f32 1.0, %v622
  %v624 = vmul.f32 %v621, %v623
  %v625 = vadd.f32 %v621, %v624
  %vm626 = vweird.f32 %v575
  %vm627 = vweird.f32 %v621
  %vm628 = vmor %vm626, %vm627
  %v629 = vsel %vm628, %v621, %v625
  %v630 = vand.u32 2147483647, %v575
  %vm631 = vcmp.eq.f32.partialorder %v630, 8.507059e+37
  %v632 = vand.u32 %v575, 2147483648
  %v633 = vor.u32 1.1754944e-38, %v632
  %v634 = vsel %vm631, %v633, %v629
  %v635 = vmul.f32 1.0, %v634
  %v636 = vadd.f32 %v545, %v363
  %v638 = vrot.slane %v636, 2
  %v639 = vrot.slane %v636, 3
  %640 = vrot.lane.b32.xlu0 %v638, 32
  %v641 = vpop.permute.xlu0 %640
  %642 = vrot.lane.b32.xlu0 %v639, 32
  %v643 = vpop.permute.xlu0 %642
  %v646 = vmul.f32 %v590, %v641
  %v647 = vmul.f32 %v620, %v643
  %650 = vrot.lane.b32.xlu0 %v646, 64
  %v651 = vpop.permute.xlu0 %650
  %652 = vrot.lane.b32.xlu0 %v647, 64
  %v653 = vpop.permute.xlu0 %652
  %v656 = vadd.f32 %v124, %v651
  %v657 = vadd.f32 %v127, %v653
  %v658 = vtanh.pop %v656
  %v659 = vtanh.pop %v657
  %v660 = vsub.f32 1.0, %v605
  %v661 = vsub.f32 1.0, %v635
  %664 = vrot.lane.b32.xlu0 %v658, 96
  %v665 = vpop.permute.xlu0 %664
  %666 = vrot.lane.b32.xlu0 %v659, 96
  %v667 = vpop.permute.xlu0 %666
  %v670 = vmul.f32 %v660, %v665
  %v671 = vmul.f32 %v661, %v667
  %v672 = vrot.slane %v403, 1
  %v673 = vrot.slane %v404, 1
  %v676 = vmul.f32 %v605, %v672
  %v677 = vmul.f32 %v635, %v673
  %v678 = vadd.f32 %v670, %v676
  %v679 = vadd.f32 %v671, %v677
  %v682 = vrot.slane %v518, 1
  %v683 = vsel %vm408, %v519, %v682
  %684 = vrot.lane.b32.xlu0 %v683, 96
  %v685 = vpop.permute.xlu0 %684
  %v686 = vsel %vm139, %v685, 0
  %688 = vmatpush.msra.mxu0 0.0
  %689 = vmatpush.msra.mxu0 0.0
  %690 = vmatpush.msra.mxu0 0.0
  %691 = vmatpush.msra.mxu0 0.0
  %692 = vmatpush.msra.mxu0 0.0
  %693 = vmatpush.msra.mxu0 0.0
  %694 = vmatpush.msra.mxu0 0.0
  %695 = vmatpush.msra.mxu0 0.0
  %696 = vmatpush.msra.mxu0 0.0
  %697 = vmatpush.msra.mxu0 0.0
  %698 = vmatpush.msra.mxu0 0.0
  %699 = vmatpush.msra.mxu0 0.0
  %700 = vmatpush.msra.mxu0 %v132
  %701 = vmatpush.msra.mxu0 %v131
  %702 = vmatpush.msra.mxu0 %v130
  %703 = vmatpush.msra.mxu0 %v129
  %704 = vmatmul.f32.gmra.mxu0 %v686
  %v705 = vpop.f32.mrf.mxu0
  %v706 = vadd.f32 0.0, %v705
  %707 = vdwg.mxu0
  %v709 = vrot.slane %v706, 6
  %v710 = vrot.slane %v706, 7
  %v713 = vadd.f32 %v101, %v709
  %v714 = vadd.f32 %v104, %v710
  %v715 = vxor.u32 %v713, 2147483648
  %v716 = vxor.u32 %v714, 2147483648
  %v717 = vmul.f32 %v715, 1.442695
  %v718 = vpow.pop %v717
  %v719 = vmul.f32 %v716, 1.442695
  %v720 = vpow.pop %v719
  %v721 = vadd.f32 %v718, 1.0
  %v722 = vadd.f32 %v720, 1.0
  %v723 = vrcp.pop %v721
  %v724 = vmul.f32 %v721, %v723
  %v725 = vsub.f32 1.0, %v724
  %v726 = vmul.f32 %v723, %v725
  %v727 = vadd.f32 %v723, %v726
  %vm728 = vweird.f32 %v721
  %vm729 = vweird.f32 %v723
  %vm730 = vmor %vm728, %vm729
  %v731 = vsel %vm730, %v723, %v727
  %v732 = vand.u32 2147483647, %v721
  %vm733 = vcmp.eq.f32.partialorder %v732, 8.507059e+37
  %v734 = vand.u32 %v721, 2147483648
  %v735 = vor.u32 1.1754944e-38, %v734
  %v736 = vsel %vm733, %v735, %v731
  %v737 = vmul.f32 1.0, %v736
  %v738 = vrcp.pop %v722
  %v739 = vmul.f32 %v722, %v738
  %v740 = vsub.f32 1.0, %v739
  %v741 = vmul.f32 %v738, %v740
  %v742 = vadd.f32 %v738, %v741
  %vm743 = vweird.f32 %v722
  %vm744 = vweird.f32 %v738
  %vm745 = vmor %vm743, %vm744
  %v746 = vsel %vm745, %v738, %v742
  %v747 = vand.u32 2147483647, %v722
  %vm748 = vcmp.eq.f32.partialorder %v747, 8.507059e+37
  %v749 = vand.u32 %v722, 2147483648
  %v750 = vor.u32 1.1754944e-38, %v749
  %v751 = vsel %vm748, %v750, %v746
  %v752 = vmul.f32 1.0, %v751
  %v753 = vadd.f32 %v706, %v210
  %v755 = vrot.slane %v753, 6
  %v756 = vrot.slane %v753, 7
  %757 = vrot.lane.b32.xlu0 %v755, 64
  %v758 = vpop.permute.xlu0 %757
  %759 = vrot.lane.b32.xlu0 %v756, 64
  %v760 = vpop.permute.xlu0 %759
  %v763 = vmul.f32 %v737, %v758
  %v764 = vmul.f32 %v752, %v760
  %767 = vrot.lane.b32.xlu0 %v763, 64
  %v768 = vpop.permute.xlu0 %767
  %769 = vrot.lane.b32.xlu0 %v764, 64
  %v770 = vpop.permute.xlu0 %769
  %v773 = vadd.f32 %v101, %v768
  %v774 = vadd.f32 %v104, %v770
  %v775 = vtanh.pop %v773
  %v776 = vtanh.pop %v774
  %v777 = vsub.f32 1.0, %v737
  %v778 = vsub.f32 1.0, %v752
  %781 = vrot.lane.b32.xlu0 %v775, 96
  %v782 = vpop.permute.xlu0 %781
  %783 = vrot.lane.b32.xlu0 %v776, 96
  %v784 = vpop.permute.xlu0 %783
  %v787 = vmul.f32 %v777, %v782
  %v788 = vmul.f32 %v778, %v784
  %v789 = vrot.slane %v518, 7
  %v790 = vrot.slane %v519, 7
  %v793 = vmul.f32 %v737, %v789
  %v794 = vmul.f32 %v752, %v790
  %v795 = vadd.f32 %v787, %v793
  %v796 = vadd.f32 %v788, %v794
  %v799 = vrot.slane %v678, 6
  %v800 = vrot.slane %v679, 5
  %v801 = vsel %vm408, %v800, %v799
  %v802 = vsel %vm139, %v801, 0
  %804 = vmatpush.msra.mxu0 0.0
  %805 = vmatpush.msra.mxu0 0.0
  %806 = vmatpush.msra.mxu0 0.0
  %807 = vmatpush.msra.mxu0 0.0
  %808 = vmatpush.msra.mxu0 0.0
  %809 = vmatpush.msra.mxu0 0.0
  %810 = vmatpush.msra.mxu0 0.0
  %811 = vmatpush.msra.mxu0 0.0
  %812 = vmatpush.msra.mxu0 0.0
  %813 = vmatpush.msra.mxu0 0.0
  %814 = vmatpush.msra.mxu0 0.0
  %815 = vmatpush.msra.mxu0 0.0
  %816 = vmatpush.msra.mxu0 %v136
  %817 = vmatpush.msra.mxu0 %v135
  %818 = vmatpush.msra.mxu0 %v134
  %819 = vmatpush.msra.mxu0 %v133
  %820 = vmatmul.f32.gmra.mxu0 %v802
  %v821 = vpop.f32.mrf.mxu0
  %v822 = vadd.f32 0.0, %v821
  %823 = vdwg.mxu0
  %v825 = vrot.slane %v822, 3
  %v826 = vrot.slane %v822, 4
  %827 = vrot.lane.b32.xlu0 %v825, 96
  %v828 = vpop.permute.xlu0 %827
  %829 = vrot.lane.b32.xlu0 %v826, 96
  %v830 = vpop.permute.xlu0 %829
  %v833 = vadd.f32 %v101, %v828
  %v834 = vadd.f32 %v124, %v828
  %v835 = vadd.f32 %v104, %v830
  %v836 = vadd.f32 %v127, %v830
  %v837 = vxor.u32 %v833, 2147483648
  %v838 = vxor.u32 %v834, 2147483648
  %v839 = vxor.u32 %v835, 2147483648
  %v840 = vxor.u32 %v836, 2147483648
  %v841 = vmul.f32 %v837, 1.442695
  %v842 = vpow.pop %v841
  %v843 = vmul.f32 %v838, 1.442695
  %v844 = vpow.pop %v843
  %v845 = vmul.f32 %v839, 1.442695
  %v846 = vpow.pop %v845
  %v847 = vmul.f32 %v840, 1.442695
  %v848 = vpow.pop %v847
  %v849 = vadd.f32 %v842, 1.0
  %v850 = vadd.f32 %v844, 1.0
  %v851 = vadd.f32 %v846, 1.0
  %v852 = vadd.f32 %v848, 1.0
  %v853 = vrcp.pop %v849
  %v854 = vmul.f32 %v849, %v853
  %v855 = vsub.f32 1.0, %v854
  %v856 = vmul.f32 %v853, %v855
  %v857 = vadd.f32 %v853, %v856
  %vm858 = vweird.f32 %v849
  %vm859 = vweird.f32 %v853
  %vm860 = vmor %vm858, %vm859
  %v861 = vsel %vm860, %v853, %v857
  %v862 = vand.u32 2147483647, %v849
  %vm863 = vcmp.eq.f32.partialorder %v862, 8.507059e+37
  %v864 = vand.u32 %v849, 2147483648
  %v865 = vor.u32 1.1754944e-38, %v864
  %v866 = vsel %vm863, %v865, %v861
  %v867 = vmul.f32 1.0, %v866
  %v868 = vrcp.pop %v850
  %v869 = vmul.f32 %v850, %v868
  %v870 = vsub.f32 1.0, %v869
  %v871 = vmul.f32 %v868, %v870
  %v872 = vadd.f32 %v868, %v871
  %vm873 = vweird.f32 %v850
  %vm874 = vweird.f32 %v868
  %vm875 = vmor %vm873, %vm874
  %v876 = vsel %vm875, %v868, %v872
  %v877 = vand.u32 2147483647, %v850
  %vm878 = vcmp.eq.f32.partialorder %v877, 8.507059e+37
  %v879 = vand.u32 %v850, 2147483648
  %v880 = vor.u32 1.1754944e-38, %v879
  %v881 = vsel %vm878, %v880, %v876
  %v882 = vmul.f32 1.0, %v881
  %v883 = vrcp.pop %v851
  %v884 = vmul.f32 %v851, %v883
  %v885 = vsub.f32 1.0, %v884
  %v886 = vmul.f32 %v883, %v885
  %v887 = vadd.f32 %v883, %v886
  %vm888 = vweird.f32 %v851
  %vm889 = vweird.f32 %v883
  %vm890 = vmor %vm888, %vm889
  %v891 = vsel %vm890, %v883, %v887
  %v892 = vand.u32 2147483647, %v851
  %vm893 = vcmp.eq.f32.partialorder %v892, 8.507059e+37
  %v894 = vand.u32 %v851, 2147483648
  %v895 = vor.u32 1.1754944e-38, %v894
  %v896 = vsel %vm893, %v895, %v891
  %v897 = vmul.f32 1.0, %v896
  %v898 = vrcp.pop %v852
  %v899 = vmul.f32 %v852, %v898
  %v900 = vsub.f32 1.0, %v899
  %v901 = vmul.f32 %v898, %v900
  %v902 = vadd.f32 %v898, %v901
  %vm903 = vweird.f32 %v852
  %vm904 = vweird.f32 %v898
  %vm905 = vmor %vm903, %vm904
  %v906 = vsel %vm905, %v898, %v902
  %v907 = vand.u32 2147483647, %v852
  %vm908 = vcmp.eq.f32.partialorder %v907, 8.507059e+37
  %v909 = vand.u32 %v852, 2147483648
  %v910 = vor.u32 1.1754944e-38, %v909
  %v911 = vsel %vm908, %v910, %v906
  %v912 = vmul.f32 1.0, %v911
  %v913 = vadd.f32 %v822, %v363
  %v915 = vrot.slane %v913, 3
  %v916 = vrot.slane %v913, 4
  %917 = vrot.lane.b32.xlu0 %v915, 32
  %v918 = vpop.permute.xlu0 %917
  %919 = vrot.lane.b32.xlu0 %v916, 32
  %v920 = vpop.permute.xlu0 %919
  %v923 = vmul.f32 %v867, %v918
  %v924 = vmul.f32 %v897, %v920
  %927 = vrot.lane.b32.xlu0 %v923, 64
  %v928 = vpop.permute.xlu0 %927
  %929 = vrot.lane.b32.xlu0 %v924, 64
  %v930 = vpop.permute.xlu0 %929
  %v933 = vadd.f32 %v124, %v928
  %v934 = vadd.f32 %v127, %v930
  %v935 = vtanh.pop %v933
  %v936 = vtanh.pop %v934
  %v937 = vsub.f32 1.0, %v882
  %v938 = vsub.f32 1.0, %v912
  %941 = vrot.lane.b32.xlu0 %v935, 96
  %v942 = vpop.permute.xlu0 %941
  %943 = vrot.lane.b32.xlu0 %v936, 96
  %v944 = vpop.permute.xlu0 %943
  %v947 = vmul.f32 %v937, %v942
  %v948 = vmul.f32 %v938, %v944
  %v949 = vrot.slane %v678, 1
  %v950 = vrot.slane %v679, 1
  %v953 = vmul.f32 %v882, %v949
  %v954 = vmul.f32 %v912, %v950
  %v955 = vadd.f32 %v947, %v953
  %v956 = vadd.f32 %v948, %v954
  %v959 = vrot.slane %v795, 2
  %v960 = vrot.slane %v796, 1
  %v961 = vsel %vm408, %v960, %v959
  %962 = vrot.lane.b32.xlu0 %v961, 96
  %v963 = vpop.permute.xlu0 %962
  %v964 = vsel %vm139, %v963, 0
  %966 = vmatpush.msra.mxu0 0.0
  %967 = vmatpush.msra.mxu0 0.0
  %968 = vmatpush.msra.mxu0 0.0
  %969 = vmatpush.msra.mxu0 0.0
  %970 = vmatpush.msra.mxu0 0.0
  %971 = vmatpush.msra.mxu0 0.0
  %972 = vmatpush.msra.mxu0 0.0
  %973 = vmatpush.msra.mxu0 0.0
  %974 = vmatpush.msra.mxu0 0.0
  %975 = vmatpush.msra.mxu0 0.0
  %976 = vmatpush.msra.mxu0 0.0
  %977 = vmatpush.msra.mxu0 0.0
  %978 = vmatpush.msra.mxu0 %v132
  %979 = vmatpush.msra.mxu0 %v131
  %980 = vmatpush.msra.mxu0 %v130
  %981 = vmatpush.msra.mxu0 %v129
  %982 = vmatmul.f32.gmra.mxu0 %v964
  %v983 = vpop.f32.mrf.mxu0
  %v984 = vadd.f32 0.0, %v983
  %985 = vdwg.mxu0
  %v987 = vrot.slane %v984, 5
  %v988 = vrot.slane %v984, 6
  %v991 = vadd.f32 %v101, %v987
  %v992 = vadd.f32 %v104, %v988
  %v993 = vxor.u32 %v991, 2147483648
  %v994 = vxor.u32 %v992, 2147483648
  %v995 = vmul.f32 %v993, 1.442695
  %v996 = vpow.pop %v995
  %v997 = vmul.f32 %v994, 1.442695
  %v998 = vpow.pop %v997
  %v999 = vadd.f32 %v996, 1.0
  %v1000 = vadd.f32 %v998, 1.0
  %v1001 = vrcp.pop %v999
  %v1002 = vmul.f32 %v999, %v1001
  %v1003 = vsub.f32 1.0, %v1002
  %v1004 = vmul.f32 %v1001, %v1003
  %v1005 = vadd.f32 %v1001, %v1004
  %vm1006 = vweird.f32 %v999
  %vm1007 = vweird.f32 %v1001
  %vm1008 = vmor %vm1006, %vm1007
  %v1009 = vsel %vm1008, %v1001, %v1005
  %v1010 = vand.u32 2147483647, %v999
  %vm1011 = vcmp.eq.f32.partialorder %v1010, 8.507059e+37
  %v1012 = vand.u32 %v999, 2147483648
  %v1013 = vor.u32 1.1754944e-38, %v1012
  %v1014 = vsel %vm1011, %v1013, %v1009
  %v1015 = vmul.f32 1.0, %v1014
  %v1016 = vrcp.pop %v1000
  %v1017 = vmul.f32 %v1000, %v1016
  %v1018 = vsub.f32 1.0, %v1017
  %v1019 = vmul.f32 %v1016, %v1018
  %v1020 = vadd.f32 %v1016, %v1019
  %vm1021 = vweird.f32 %v1000
  %vm1022 = vweird.f32 %v1016
  %vm1023 = vmor %vm1021, %vm1022
  %v1024 = vsel %vm1023, %v1016, %v1020
  %v1025 = vand.u32 2147483647, %v1000
  %vm1026 = vcmp.eq.f32.partialorder %v1025, 8.507059e+37
  %v1027 = vand.u32 %v1000, 2147483648
  %v1028 = vor.u32 1.1754944e-38, %v1027
  %v1029 = vsel %vm1026, %v1028, %v1024
  %v1030 = vmul.f32 1.0, %v1029
  %v1031 = vadd.f32 %v984, %v210
  %v1033 = vrot.slane %v1031, 5
  %v1034 = vrot.slane %v1031, 6
  %1035 = vrot.lane.b32.xlu0 %v1033, 64
  %v1036 = vpop.permute.xlu0 %1035
  %1037 = vrot.lane.b32.xlu0 %v1034, 64
  %v1038 = vpop.permute.xlu0 %1037
  %v1041 = vmul.f32 %v1015, %v1036
  %v1042 = vmul.f32 %v1030, %v1038
  %1045 = vrot.lane.b32.xlu0 %v1041, 64
  %v1046 = vpop.permute.xlu0 %1045
  %1047 = vrot.lane.b32.xlu0 %v1042, 64
  %v1048 = vpop.permute.xlu0 %1047
  %v1051 = vadd.f32 %v101, %v1046
  %v1052 = vadd.f32 %v104, %v1048
  %v1053 = vtanh.pop %v1051
  %v1054 = vtanh.pop %v1052
  %v1055 = vsub.f32 1.0, %v1015
  %v1056 = vsub.f32 1.0, %v1030
  %1059 = vrot.lane.b32.xlu0 %v1053, 96
  %v1060 = vpop.permute.xlu0 %1059
  %1061 = vrot.lane.b32.xlu0 %v1054, 96
  %v1062 = vpop.permute.xlu0 %1061
  %v1065 = vmul.f32 %v1055, %v1060
  %v1066 = vmul.f32 %v1056, %v1062
  %v1067 = vrot.slane %v795, 7
  %v1068 = vrot.slane %v796, 7
  %v1071 = vmul.f32 %v1015, %v1067
  %v1072 = vmul.f32 %v1030, %v1068
  %v1073 = vadd.f32 %v1065, %v1071
  %v1074 = vadd.f32 %v1066, %v1072
  %v1077 = vrot.slane %v955, 5
  %v1078 = vrot.slane %v956, 4
  %v1079 = vsel %vm408, %v1078, %v1077
  %v1080 = vsel %vm139, %v1079, 0
  %1082 = vmatpush.msra.mxu0 0.0
  %1083 = vmatpush.msra.mxu0 0.0
  %1084 = vmatpush.msra.mxu0 0.0
  %1085 = vmatpush.msra.mxu0 0.0
  %1086 = vmatpush.msra.mxu0 0.0
  %1087 = vmatpush.msra.mxu0 0.0
  %1088 = vmatpush.msra.mxu0 0.0
  %1089 = vmatpush.msra.mxu0 0.0
  %1090 = vmatpush.msra.mxu0 0.0
  %1091 = vmatpush.msra.mxu0 0.0
  %1092 = vmatpush.msra.mxu0 0.0
  %1093 = vmatpush.msra.mxu0 0.0
  %1094 = vmatpush.msra.mxu0 %v136
  %1095 = vmatpush.msra.mxu0 %v135
  %1096 = vmatpush.msra.mxu0 %v134
  %1097 = vmatpush.msra.mxu0 %v133
  %1098 = vmatmul.f32.gmra.mxu0 %v1080
  %v1099 = vpop.f32.mrf.mxu0
  %v1100 = vadd.f32 0.0, %v1099
  %1101 = vdwg.mxu0
  %v1103 = vrot.slane %v1100, 4
  %v1104 = vrot.slane %v1100, 5
  %1105 = vrot.lane.b32.xlu0 %v1103, 96
  %v1106 = vpop.permute.xlu0 %1105
  %1107 = vrot.lane.b32.xlu0 %v1104, 96
  %v1108 = vpop.permute.xlu0 %1107
  %v1111 = vadd.f32 %v101, %v1106
  %v1112 = vadd.f32 %v124, %v1106
  %v1113 = vadd.f32 %v104, %v1108
  %v1114 = vadd.f32 %v127, %v1108
  %v1115 = vxor.u32 %v1111, 2147483648
  %v1116 = vxor.u32 %v1112, 2147483648
  %v1117 = vxor.u32 %v1113, 2147483648
  %v1118 = vxor.u32 %v1114, 2147483648
  %v1119 = vmul.f32 %v1115, 1.442695
  %v1120 = vpow.pop %v1119
  %v1121 = vmul.f32 %v1116, 1.442695
  %v1122 = vpow.pop %v1121
  %v1123 = vmul.f32 %v1117, 1.442695
  %v1124 = vpow.pop %v1123
  %v1125 = vmul.f32 %v1118, 1.442695
  %v1126 = vpow.pop %v1125
  %v1127 = vadd.f32 %v1120, 1.0
  %v1128 = vadd.f32 %v1122, 1.0
  %v1129 = vadd.f32 %v1124, 1.0
  %v1130 = vadd.f32 %v1126, 1.0
  %v1131 = vrcp.pop %v1127
  %v1132 = vmul.f32 %v1127, %v1131
  %v1133 = vsub.f32 1.0, %v1132
  %v1134 = vmul.f32 %v1131, %v1133
  %v1135 = vadd.f32 %v1131, %v1134
  %vm1136 = vweird.f32 %v1127
  %vm1137 = vweird.f32 %v1131
  %vm1138 = vmor %vm1136, %vm1137
  %v1139 = vsel %vm1138, %v1131, %v1135
  %v1140 = vand.u32 2147483647, %v1127
  %vm1141 = vcmp.eq.f32.partialorder %v1140, 8.507059e+37
  %v1142 = vand.u32 %v1127, 2147483648
  %v1143 = vor.u32 1.1754944e-38, %v1142
  %v1144 = vsel %vm1141, %v1143, %v1139
  %v1145 = vmul.f32 1.0, %v1144
  %v1146 = vrcp.pop %v1128
  %v1147 = vmul.f32 %v1128, %v1146
  %v1148 = vsub.f32 1.0, %v1147
  %v1149 = vmul.f32 %v1146, %v1148
  %v1150 = vadd.f32 %v1146, %v1149
  %vm1151 = vweird.f32 %v1128
  %vm1152 = vweird.f32 %v1146
  %vm1153 = vmor %vm1151, %vm1152
  %v1154 = vsel %vm1153, %v1146, %v1150
  %v1155 = vand.u32 2147483647, %v1128
  %vm1156 = vcmp.eq.f32.partialorder %v1155, 8.507059e+37
  %v1157 = vand.u32 %v1128, 2147483648
  %v1158 = vor.u32 1.1754944e-38, %v1157
  %v1159 = vsel %vm1156, %v1158, %v1154
  %v1160 = vmul.f32 1.0, %v1159
  %v1161 = vrcp.pop %v1129
  %v1162 = vmul.f32 %v1129, %v1161
  %v1163 = vsub.f32 1.0, %v1162
  %v1164 = vmul.f32 %v1161, %v1163
  %v1165 = vadd.f32 %v1161, %v1164
  %vm1166 = vweird.f32 %v1129
  %vm1167 = vweird.f32 %v1161
  %vm1168 = vmor %vm1166, %vm1167
  %v1169 = vsel %vm1168, %v1161, %v1165
  %v1170 = vand.u32 2147483647, %v1129
  %vm1171 = vcmp.eq.f32.partialorder %v1170, 8.507059e+37
  %v1172 = vand.u32 %v1129, 2147483648
  %v1173 = vor.u32 1.1754944e-38, %v1172
  %v1174 = vsel %vm1171, %v1173, %v1169
  %v1175 = vmul.f32 1.0, %v1174
  %v1176 = vrcp.pop %v1130
  %v1177 = vmul.f32 %v1130, %v1176
  %v1178 = vsub.f32 1.0, %v1177
  %v1179 = vmul.f32 %v1176, %v1178
  %v1180 = vadd.f32 %v1176, %v1179
  %vm1181 = vweird.f32 %v1130
  %vm1182 = vweird.f32 %v1176
  %vm1183 = vmor %vm1181, %vm1182
  %v1184 = vsel %vm1183, %v1176, %v1180
  %v1185 = vand.u32 2147483647, %v1130
  %vm1186 = vcmp.eq.f32.partialorder %v1185, 8.507059e+37
  %v1187 = vand.u32 %v1130, 2147483648
  %v1188 = vor.u32 1.1754944e-38, %v1187
  %v1189 = vsel %vm1186, %v1188, %v1184
  %v1190 = vmul.f32 1.0, %v1189
  %v1191 = vadd.f32 %v1100, %v363
  %v1193 = vrot.slane %v1191, 4
  %v1194 = vrot.slane %v1191, 5
  %1195 = vrot.lane.b32.xlu0 %v1193, 32
  %v1196 = vpop.permute.xlu0 %1195
  %1197 = vrot.lane.b32.xlu0 %v1194, 32
  %v1198 = vpop.permute.xlu0 %1197
  %v1201 = vmul.f32 %v1145, %v1196
  %v1202 = vmul.f32 %v1175, %v1198
  %1205 = vrot.lane.b32.xlu0 %v1201, 64
  %v1206 = vpop.permute.xlu0 %1205
  %1207 = vrot.lane.b32.xlu0 %v1202, 64
  %v1208 = vpop.permute.xlu0 %1207
  %v1211 = vadd.f32 %v124, %v1206
  %v1212 = vadd.f32 %v127, %v1208
  %v1213 = vtanh.pop %v1211
  %v1214 = vtanh.pop %v1212
  %v1215 = vsub.f32 1.0, %v1160
  %v1216 = vsub.f32 1.0, %v1190
  %1219 = vrot.lane.b32.xlu0 %v1213, 96
  %v1220 = vpop.permute.xlu0 %1219
  %1221 = vrot.lane.b32.xlu0 %v1214, 96
  %v1222 = vpop.permute.xlu0 %1221
  %v1225 = vmul.f32 %v1215, %v1220
  %v1226 = vmul.f32 %v1216, %v1222
  %v1227 = vrot.slane %v955, 1
  %v1228 = vrot.slane %v956, 1
  %v1231 = vmul.f32 %v1160, %v1227
  %v1232 = vmul.f32 %v1190, %v1228
  %v1233 = vadd.f32 %v1225, %v1231
  %v1234 = vadd.f32 %v1226, %v1232
  %v1237 = vrot.slane %v1073, 3
  %v1238 = vrot.slane %v1074, 2
  %v1239 = vsel %vm408, %v1238, %v1237
  %1240 = vrot.lane.b32.xlu0 %v1239, 96
  %v1241 = vpop.permute.xlu0 %1240
  %v1242 = vsel %vm139, %v1241, 0
  %1244 = vmatpush.msra.mxu0 0.0
  %1245 = vmatpush.msra.mxu0 0.0
  %1246 = vmatpush.msra.mxu0 0.0
  %1247 = vmatpush.msra.mxu0 0.0
  %1248 = vmatpush.msra.mxu0 0.0
  %1249 = vmatpush.msra.mxu0 0.0
  %1250 = vmatpush.msra.mxu0 0.0
  %1251 = vmatpush.msra.mxu0 0.0
  %1252 = vmatpush.msra.mxu0 0.0
  %1253 = vmatpush.msra.mxu0 0.0
  %1254 = vmatpush.msra.mxu0 0.0
  %1255 = vmatpush.msra.mxu0 0.0
  %1256 = vmatpush.msra.mxu0 %v132
  %1257 = vmatpush.msra.mxu0 %v131
  %1258 = vmatpush.msra.mxu0 %v130
  %1259 = vmatpush.msra.mxu0 %v129
  %1260 = vmatmul.f32.gmra.mxu0 %v1242
  %v1261 = vpop.f32.mrf.mxu0
  %v1262 = vadd.f32 0.0, %v1261
  %1263 = vdwg.mxu0
  %v1265 = vrot.slane %v1262, 4
  %v1266 = vrot.slane %v1262, 5
  %v1269 = vadd.f32 %v101, %v1265
  %v1270 = vadd.f32 %v104, %v1266
  %v1271 = vxor.u32 %v1269, 2147483648
  %v1272 = vxor.u32 %v1270, 2147483648
  %v1273 = vmul.f32 %v1271, 1.442695
  %v1274 = vpow.pop %v1273
  %v1275 = vmul.f32 %v1272, 1.442695
  %v1276 = vpow.pop %v1275
  %v1277 = vadd.f32 %v1274, 1.0
  %v1278 = vadd.f32 %v1276, 1.0
  %v1279 = vrcp.pop %v1277
  %v1280 = vmul.f32 %v1277, %v1279
  %v1281 = vsub.f32 1.0, %v1280
  %v1282 = vmul.f32 %v1279, %v1281
  %v1283 = vadd.f32 %v1279, %v1282
  %vm1284 = vweird.f32 %v1277
  %vm1285 = vweird.f32 %v1279
  %vm1286 = vmor %vm1284, %vm1285
  %v1287 = vsel %vm1286, %v1279, %v1283
  %v1288 = vand.u32 2147483647, %v1277
  %vm1289 = vcmp.eq.f32.partialorder %v1288, 8.507059e+37
  %v1290 = vand.u32 %v1277, 2147483648
  %v1291 = vor.u32 1.1754944e-38, %v1290
  %v1292 = vsel %vm1289, %v1291, %v1287
  %v1293 = vmul.f32 1.0, %v1292
  %v1294 = vrcp.pop %v1278
  %v1295 = vmul.f32 %v1278, %v1294
  %v1296 = vsub.f32 1.0, %v1295
  %v1297 = vmul.f32 %v1294, %v1296
  %v1298 = vadd.f32 %v1294, %v1297
  %vm1299 = vweird.f32 %v1278
  %vm1300 = vweird.f32 %v1294
  %vm1301 = vmor %vm1299, %vm1300
  %v1302 = vsel %vm1301, %v1294, %v1298
  %v1303 = vand.u32 2147483647, %v1278
  %vm1304 = vcmp.eq.f32.partialorder %v1303, 8.507059e+37
  %v1305 = vand.u32 %v1278, 2147483648
  %v1306 = vor.u32 1.1754944e-38, %v1305
  %v1307 = vsel %vm1304, %v1306, %v1302
  %v1308 = vmul.f32 1.0, %v1307
  %v1309 = vadd.f32 %v1262, %v210
  %v1311 = vrot.slane %v1309, 4
  %v1312 = vrot.slane %v1309, 5
  %1313 = vrot.lane.b32.xlu0 %v1311, 64
  %v1314 = vpop.permute.xlu0 %1313
  %1315 = vrot.lane.b32.xlu0 %v1312, 64
  %v1316 = vpop.permute.xlu0 %1315
  %v1319 = vmul.f32 %v1293, %v1314
  %v1320 = vmul.f32 %v1308, %v1316
  %1323 = vrot.lane.b32.xlu0 %v1319, 64
  %v1324 = vpop.permute.xlu0 %1323
  %1325 = vrot.lane.b32.xlu0 %v1320, 64
  %v1326 = vpop.permute.xlu0 %1325
  %v1329 = vadd.f32 %v101, %v1324
  %v1330 = vadd.f32 %v104, %v1326
  %v1331 = vtanh.pop %v1329
  %v1332 = vtanh.pop %v1330
  %v1333 = vsub.f32 1.0, %v1293
  %v1334 = vsub.f32 1.0, %v1308
  %1337 = vrot.lane.b32.xlu0 %v1331, 96
  %v1338 = vpop.permute.xlu0 %1337
  %1339 = vrot.lane.b32.xlu0 %v1332, 96
  %v1340 = vpop.permute.xlu0 %1339
  %v1343 = vmul.f32 %v1333, %v1338
  %v1344 = vmul.f32 %v1334, %v1340
  %v1345 = vrot.slane %v1073, 7
  %v1346 = vrot.slane %v1074, 7
  %v1349 = vmul.f32 %v1293, %v1345
  %v1350 = vmul.f32 %v1308, %v1346
  %v1351 = vadd.f32 %v1343, %v1349
  %v1352 = vadd.f32 %v1344, %v1350
  %v1355 = vrot.slane %v1233, 4
  %v1356 = vrot.slane %v1234, 3
  %v1357 = vsel %vm408, %v1356, %v1355
  %v1358 = vsel %vm139, %v1357, 0
  %1360 = vmatpush.msra.mxu0 0.0
  %1361 = vmatpush.msra.mxu0 0.0
  %1362 = vmatpush.msra.mxu0 0.0
  %1363 = vmatpush.msra.mxu0 0.0
  %1364 = vmatpush.msra.mxu0 0.0
  %1365 = vmatpush.msra.mxu0 0.0
  %1366 = vmatpush.msra.mxu0 0.0
  %1367 = vmatpush.msra.mxu0 0.0
  %1368 = vmatpush.msra.mxu0 0.0
  %1369 = vmatpush.msra.mxu0 0.0
  %1370 = vmatpush.msra.mxu0 0.0
  %1371 = vmatpush.msra.mxu0 0.0
  %1372 = vmatpush.msra.mxu0 %v136
  %1373 = vmatpush.msra.mxu0 %v135
  %1374 = vmatpush.msra.mxu0 %v134
  %1375 = vmatpush.msra.mxu0 %v133
  %1376 = vmatmul.f32.gmra.mxu0 %v1358
  %v1377 = vpop.f32.mrf.mxu0
  %v1378 = vadd.f32 0.0, %v1377
  %1379 = vdwg.mxu0
  %v1381 = vrot.slane %v1378, 5
  %v1382 = vrot.slane %v1378, 6
  %1383 = vrot.lane.b32.xlu0 %v1381, 96
  %v1384 = vpop.permute.xlu0 %1383
  %1385 = vrot.lane.b32.xlu0 %v1382, 96
  %v1386 = vpop.permute.xlu0 %1385
  %v1389 = vadd.f32 %v101, %v1384
  %v1390 = vadd.f32 %v124, %v1384
  %v1391 = vadd.f32 %v104, %v1386
  %v1392 = vadd.f32 %v127, %v1386
  %v1393 = vxor.u32 %v1389, 2147483648
  %v1394 = vxor.u32 %v1390, 2147483648
  %v1395 = vxor.u32 %v1391, 2147483648
  %v1396 = vxor.u32 %v1392, 2147483648
  %v1397 = vmul.f32 %v1393, 1.442695
  %v1398 = vpow.pop %v1397
  %v1399 = vmul.f32 %v1394, 1.442695
  %v1400 = vpow.pop %v1399
  %v1401 = vmul.f32 %v1395, 1.442695
  %v1402 = vpow.pop %v1401
  %v1403 = vmul.f32 %v1396, 1.442695
  %v1404 = vpow.pop %v1403
  %v1405 = vadd.f32 %v1398, 1.0
  %v1406 = vadd.f32 %v1400, 1.0
  %v1407 = vadd.f32 %v1402, 1.0
  %v1408 = vadd.f32 %v1404, 1.0
  %v1409 = vrcp.pop %v1405
  %v1410 = vmul.f32 %v1405, %v1409
  %v1411 = vsub.f32 1.0, %v1410
  %v1412 = vmul.f32 %v1409, %v1411
  %v1413 = vadd.f32 %v1409, %v1412
  %vm1414 = vweird.f32 %v1405
  %vm1415 = vweird.f32 %v1409
  %vm1416 = vmor %vm1414, %vm1415
  %v1417 = vsel %vm1416, %v1409, %v1413
  %v1418 = vand.u32 2147483647, %v1405
  %vm1419 = vcmp.eq.f32.partialorder %v1418, 8.507059e+37
  %v1420 = vand.u32 %v1405, 2147483648
  %v1421 = vor.u32 1.1754944e-38, %v1420
  %v1422 = vsel %vm1419, %v1421, %v1417
  %v1423 = vmul.f32 1.0, %v1422
  %v1424 = vrcp.pop %v1406
  %v1425 = vmul.f32 %v1406, %v1424
  %v1426 = vsub.f32 1.0, %v1425
  %v1427 = vmul.f32 %v1424, %v1426
  %v1428 = vadd.f32 %v1424, %v1427
  %vm1429 = vweird.f32 %v1406
  %vm1430 = vweird.f32 %v1424
  %vm1431 = vmor %vm1429, %vm1430
  %v1432 = vsel %vm1431, %v1424, %v1428
  %v1433 = vand.u32 2147483647, %v1406
  %vm1434 = vcmp.eq.f32.partialorder %v1433, 8.507059e+37
  %v1435 = vand.u32 %v1406, 2147483648
  %v1436 = vor.u32 1.1754944e-38, %v1435
  %v1437 = vsel %vm1434, %v1436, %v1432
  %v1438 = vmul.f32 1.0, %v1437
  %v1439 = vrcp.pop %v1407
  %v1440 = vmul.f32 %v1407, %v1439
  %v1441 = vsub.f32 1.0, %v1440
  %v1442 = vmul.f32 %v1439, %v1441
  %v1443 = vadd.f32 %v1439, %v1442
  %vm1444 = vweird.f32 %v1407
  %vm1445 = vweird.f32 %v1439
  %vm1446 = vmor %vm1444, %vm1445
  %v1447 = vsel %vm1446, %v1439, %v1443
  %v1448 = vand.u32 2147483647, %v1407
  %vm1449 = vcmp.eq.f32.partialorder %v1448, 8.507059e+37
  %v1450 = vand.u32 %v1407, 2147483648
  %v1451 = vor.u32 1.1754944e-38, %v1450
  %v1452 = vsel %vm1449, %v1451, %v1447
  %v1453 = vmul.f32 1.0, %v1452
  %v1454 = vrcp.pop %v1408
  %v1455 = vmul.f32 %v1408, %v1454
  %v1456 = vsub.f32 1.0, %v1455
  %v1457 = vmul.f32 %v1454, %v1456
  %v1458 = vadd.f32 %v1454, %v1457
  %vm1459 = vweird.f32 %v1408
  %vm1460 = vweird.f32 %v1454
  %vm1461 = vmor %vm1459, %vm1460
  %v1462 = vsel %vm1461, %v1454, %v1458
  %v1463 = vand.u32 2147483647, %v1408
  %vm1464 = vcmp.eq.f32.partialorder %v1463, 8.507059e+37
  %v1465 = vand.u32 %v1408, 2147483648
  %v1466 = vor.u32 1.1754944e-38, %v1465
  %v1467 = vsel %vm1464, %v1466, %v1462
  %v1468 = vmul.f32 1.0, %v1467
  %v1469 = vadd.f32 %v1378, %v363
  %v1471 = vrot.slane %v1469, 5
  %v1472 = vrot.slane %v1469, 6
  %1473 = vrot.lane.b32.xlu0 %v1471, 32
  %v1474 = vpop.permute.xlu0 %1473
  %1475 = vrot.lane.b32.xlu0 %v1472, 32
  %v1476 = vpop.permute.xlu0 %1475
  %v1479 = vmul.f32 %v1423, %v1474
  %v1480 = vmul.f32 %v1453, %v1476
  %1483 = vrot.lane.b32.xlu0 %v1479, 64
  %v1484 = vpop.permute.xlu0 %1483
  %1485 = vrot.lane.b32.xlu0 %v1480, 64
  %v1486 = vpop.permute.xlu0 %1485
  %v1489 = vadd.f32 %v124, %v1484
  %v1490 = vadd.f32 %v127, %v1486
  %v1491 = vtanh.pop %v1489
  %v1492 = vtanh.pop %v1490
  %v1493 = vsub.f32 1.0, %v1438
  %v1494 = vsub.f32 1.0, %v1468
  %1497 = vrot.lane.b32.xlu0 %v1491, 96
  %v1498 = vpop.permute.xlu0 %1497
  %1499 = vrot.lane.b32.xlu0 %v1492, 96
  %v1500 = vpop.permute.xlu0 %1499
  %v1503 = vmul.f32 %v1493, %v1498
  %v1504 = vmul.f32 %v1494, %v1500
  %v1505 = vrot.slane %v1233, 1
  %v1506 = vrot.slane %v1234, 1
  %v1509 = vmul.f32 %v1438, %v1505
  %v1510 = vmul.f32 %v1468, %v1506
  %v1511 = vadd.f32 %v1503, %v1509
  %v1512 = vadd.f32 %v1504, %v1510
  %v1515 = vrot.slane %v1351, 4
  %v1516 = vrot.slane %v1352, 3
  %v1517 = vsel %vm408, %v1516, %v1515
  %1518 = vrot.lane.b32.xlu0 %v1517, 96
  %v1519 = vpop.permute.xlu0 %1518
  %v1520 = vsel %vm139, %v1519, 0
  %1522 = vmatpush.msra.mxu0 0.0
  %1523 = vmatpush.msra.mxu0 0.0
  %1524 = vmatpush.msra.mxu0 0.0
  %1525 = vmatpush.msra.mxu0 0.0
  %1526 = vmatpush.msra.mxu0 0.0
  %1527 = vmatpush.msra.mxu0 0.0
  %1528 = vmatpush.msra.mxu0 0.0
  %1529 = vmatpush.msra.mxu0 0.0
  %1530 = vmatpush.msra.mxu0 0.0
  %1531 = vmatpush.msra.mxu0 0.0
  %1532 = vmatpush.msra.mxu0 0.0
  %1533 = vmatpush.msra.mxu0 0.0
  %1534 = vmatpush.msra.mxu0 %v132
  %1535 = vmatpush.msra.mxu0 %v131
  %1536 = vmatpush.msra.mxu0 %v130
  %1537 = vmatpush.msra.mxu0 %v129
  %1538 = vmatmul.f32.gmra.mxu0 %v1520
  %v1539 = vpop.f32.mrf.mxu0
  %v1540 = vadd.f32 0.0, %v1539
  %1541 = vdwg.mxu0
  %v1543 = vrot.slane %v1540, 3
  %v1544 = vrot.slane %v1540, 4
  %v1547 = vadd.f32 %v101, %v1543
  %v1548 = vadd.f32 %v104, %v1544
  %v1549 = vxor.u32 %v1547, 2147483648
  %v1550 = vxor.u32 %v1548, 2147483648
  %v1551 = vmul.f32 %v1549, 1.442695
  %v1552 = vpow.pop %v1551
  %v1553 = vmul.f32 %v1550, 1.442695
  %v1554 = vpow.pop %v1553
  %v1555 = vadd.f32 %v1552, 1.0
  %v1556 = vadd.f32 %v1554, 1.0
  %v1557 = vrcp.pop %v1555
  %v1558 = vmul.f32 %v1555, %v1557
  %v1559 = vsub.f32 1.0, %v1558
  %v1560 = vmul.f32 %v1557, %v1559
  %v1561 = vadd.f32 %v1557, %v1560
  %vm1562 = vweird.f32 %v1555
  %vm1563 = vweird.f32 %v1557
  %vm1564 = vmor %vm1562, %vm1563
  %v1565 = vsel %vm1564, %v1557, %v1561
  %v1566 = vand.u32 2147483647, %v1555
  %vm1567 = vcmp.eq.f32.partialorder %v1566, 8.507059e+37
  %v1568 = vand.u32 %v1555, 2147483648
  %v1569 = vor.u32 1.1754944e-38, %v1568
  %v1570 = vsel %vm1567, %v1569, %v1565
  %v1571 = vmul.f32 1.0, %v1570
  %v1572 = vrcp.pop %v1556
  %v1573 = vmul.f32 %v1556, %v1572
  %v1574 = vsub.f32 1.0, %v1573
  %v1575 = vmul.f32 %v1572, %v1574
  %v1576 = vadd.f32 %v1572, %v1575
  %vm1577 = vweird.f32 %v1556
  %vm1578 = vweird.f32 %v1572
  %vm1579 = vmor %vm1577, %vm1578
  %v1580 = vsel %vm1579, %v1572, %v1576
  %v1581 = vand.u32 2147483647, %v1556
  %vm1582 = vcmp.eq.f32.partialorder %v1581, 8.507059e+37
  %v1583 = vand.u32 %v1556, 2147483648
  %v1584 = vor.u32 1.1754944e-38, %v1583
  %v1585 = vsel %vm1582, %v1584, %v1580
  %v1586 = vmul.f32 1.0, %v1585
  %v1587 = vadd.f32 %v1540, %v210
  %v1589 = vrot.slane %v1587, 3
  %v1590 = vrot.slane %v1587, 4
  %1591 = vrot.lane.b32.xlu0 %v1589, 64
  %v1592 = vpop.permute.xlu0 %1591
  %1593 = vrot.lane.b32.xlu0 %v1590, 64
  %v1594 = vpop.permute.xlu0 %1593
  %v1597 = vmul.f32 %v1571, %v1592
  %v1598 = vmul.f32 %v1586, %v1594
  %1601 = vrot.lane.b32.xlu0 %v1597, 64
  %v1602 = vpop.permute.xlu0 %1601
  %1603 = vrot.lane.b32.xlu0 %v1598, 64
  %v1604 = vpop.permute.xlu0 %1603
  %v1607 = vadd.f32 %v101, %v1602
  %v1608 = vadd.f32 %v104, %v1604
  %v1609 = vtanh.pop %v1607
  %v1610 = vtanh.pop %v1608
  %v1611 = vsub.f32 1.0, %v1571
  %v1612 = vsub.f32 1.0, %v1586
  %1615 = vrot.lane.b32.xlu0 %v1609, 96
  %v1616 = vpop.permute.xlu0 %1615
  %1617 = vrot.lane.b32.xlu0 %v1610, 96
  %v1618 = vpop.permute.xlu0 %1617
  %v1621 = vmul.f32 %v1611, %v1616
  %v1622 = vmul.f32 %v1612, %v1618
  %v1623 = vrot.slane %v1351, 7
  %v1624 = vrot.slane %v1352, 7
  %v1627 = vmul.f32 %v1571, %v1623
  %v1628 = vmul.f32 %v1586, %v1624
  %v1629 = vadd.f32 %v1621, %v1627
  %v1630 = vadd.f32 %v1622, %v1628
  %v1633 = vrot.slane %v1511, 3
  %v1634 = vrot.slane %v1512, 2
  %v1635 = vsel %vm408, %v1634, %v1633
  %v1636 = vsel %vm139, %v1635, 0
  %1638 = vmatpush.msra.mxu0 0.0
  %1639 = vmatpush.msra.mxu0 0.0
  %1640 = vmatpush.msra.mxu0 0.0
  %1641 = vmatpush.msra.mxu0 0.0
  %1642 = vmatpush.msra.mxu0 0.0
  %1643 = vmatpush.msra.mxu0 0.0
  %1644 = vmatpush.msra.mxu0 0.0
  %1645 = vmatpush.msra.mxu0 0.0
  %1646 = vmatpush.msra.mxu0 0.0
  %1647 = vmatpush.msra.mxu0 0.0
  %1648 = vmatpush.msra.mxu0 0.0
  %1649 = vmatpush.msra.mxu0 0.0
  %1650 = vmatpush.msra.mxu0 %v136
  %1651 = vmatpush.msra.mxu0 %v135
  %1652 = vmatpush.msra.mxu0 %v134
  %1653 = vmatpush.msra.mxu0 %v133
  %1654 = vmatmul.f32.gmra.mxu0 %v1636
  %v1655 = vpop.f32.mrf.mxu0
  %v1656 = vadd.f32 0.0, %v1655
  %1657 = vdwg.mxu0
  %v1659 = vrot.slane %v1656, 6
  %v1660 = vrot.slane %v1656, 7
  %1661 = vrot.lane.b32.xlu0 %v1659, 96
  %v1662 = vpop.permute.xlu0 %1661
  %1663 = vrot.lane.b32.xlu0 %v1660, 96
  %v1664 = vpop.permute.xlu0 %1663
  %v1667 = vadd.f32 %v101, %v1662
  %v1668 = vadd.f32 %v124, %v1662
  %v1669 = vadd.f32 %v104, %v1664
  %v1670 = vadd.f32 %v127, %v1664
  %v1671 = vxor.u32 %v1667, 2147483648
  %v1672 = vxor.u32 %v1668, 2147483648
  %v1673 = vxor.u32 %v1669, 2147483648
  %v1674 = vxor.u32 %v1670, 2147483648
  %v1675 = vmul.f32 %v1671, 1.442695
  %v1676 = vpow.pop %v1675
  %v1677 = vmul.f32 %v1672, 1.442695
  %v1678 = vpow.pop %v1677
  %v1679 = vmul.f32 %v1673, 1.442695
  %v1680 = vpow.pop %v1679
  %v1681 = vmul.f32 %v1674, 1.442695
  %v1682 = vpow.pop %v1681
  %v1683 = vadd.f32 %v1676, 1.0
  %v1684 = vadd.f32 %v1678, 1.0
  %v1685 = vadd.f32 %v1680, 1.0
  %v1686 = vadd.f32 %v1682, 1.0
  %v1687 = vrcp.pop %v1683
  %v1688 = vmul.f32 %v1683, %v1687
  %v1689 = vsub.f32 1.0, %v1688
  %v1690 = vmul.f32 %v1687, %v1689
  %v1691 = vadd.f32 %v1687, %v1690
  %vm1692 = vweird.f32 %v1683
  %vm1693 = vweird.f32 %v1687
  %vm1694 = vmor %vm1692, %vm1693
  %v1695 = vsel %vm1694, %v1687, %v1691
  %v1696 = vand.u32 2147483647, %v1683
  %vm1697 = vcmp.eq.f32.partialorder %v1696, 8.507059e+37
  %v1698 = vand.u32 %v1683, 2147483648
  %v1699 = vor.u32 1.1754944e-38, %v1698
  %v1700 = vsel %vm1697, %v1699, %v1695
  %v1701 = vmul.f32 1.0, %v1700
  %v1702 = vrcp.pop %v1684
  %v1703 = vmul.f32 %v1684, %v1702
  %v1704 = vsub.f32 1.0, %v1703
  %v1705 = vmul.f32 %v1702, %v1704
  %v1706 = vadd.f32 %v1702, %v1705
  %vm1707 = vweird.f32 %v1684
  %vm1708 = vweird.f32 %v1702
  %vm1709 = vmor %vm1707, %vm1708
  %v1710 = vsel %vm1709, %v1702, %v1706
  %v1711 = vand.u32 2147483647, %v1684
  %vm1712 = vcmp.eq.f32.partialorder %v1711, 8.507059e+37
  %v1713 = vand.u32 %v1684, 2147483648
  %v1714 = vor.u32 1.1754944e-38, %v1713
  %v1715 = vsel %vm1712, %v1714, %v1710
  %v1716 = vmul.f32 1.0, %v1715
  %v1717 = vrcp.pop %v1685
  %v1718 = vmul.f32 %v1685, %v1717
  %v1719 = vsub.f32 1.0, %v1718
  %v1720 = vmul.f32 %v1717, %v1719
  %v1721 = vadd.f32 %v1717, %v1720
  %vm1722 = vweird.f32 %v1685
  %vm1723 = vweird.f32 %v1717
  %vm1724 = vmor %vm1722, %vm1723
  %v1725 = vsel %vm1724, %v1717, %v1721
  %v1726 = vand.u32 2147483647, %v1685
  %vm1727 = vcmp.eq.f32.partialorder %v1726, 8.507059e+37
  %v1728 = vand.u32 %v1685, 2147483648
  %v1729 = vor.u32 1.1754944e-38, %v1728
  %v1730 = vsel %vm1727, %v1729, %v1725
  %v1731 = vmul.f32 1.0, %v1730
  %v1732 = vrcp.pop %v1686
  %v1733 = vmul.f32 %v1686, %v1732
  %v1734 = vsub.f32 1.0, %v1733
  %v1735 = vmul.f32 %v1732, %v1734
  %v1736 = vadd.f32 %v1732, %v1735
  %vm1737 = vweird.f32 %v1686
  %vm1738 = vweird.f32 %v1732
  %vm1739 = vmor %vm1737, %vm1738
  %v1740 = vsel %vm1739, %v1732, %v1736
  %v1741 = vand.u32 2147483647, %v1686
  %vm1742 = vcmp.eq.f32.partialorder %v1741, 8.507059e+37
  %v1743 = vand.u32 %v1686, 2147483648
  %v1744 = vor.u32 1.1754944e-38, %v1743
  %v1745 = vsel %vm1742, %v1744, %v1740
  %v1746 = vmul.f32 1.0, %v1745
  %v1747 = vadd.f32 %v1656, %v363
  %v1749 = vrot.slane %v1747, 6
  %v1750 = vrot.slane %v1747, 7
  %1751 = vrot.lane.b32.xlu0 %v1749, 32
  %v1752 = vpop.permute.xlu0 %1751
  %1753 = vrot.lane.b32.xlu0 %v1750, 32
  %v1754 = vpop.permute.xlu0 %1753
  %v1757 = vmul.f32 %v1701, %v1752
  %v1758 = vmul.f32 %v1731, %v1754
  %1761 = vrot.lane.b32.xlu0 %v1757, 64
  %v1762 = vpop.permute.xlu0 %1761
  %1763 = vrot.lane.b32.xlu0 %v1758, 64
  %v1764 = vpop.permute.xlu0 %1763
  %v1767 = vadd.f32 %v124, %v1762
  %v1768 = vadd.f32 %v127, %v1764
  %v1769 = vtanh.pop %v1767
  %v1770 = vtanh.pop %v1768
  %v1771 = vsub.f32 1.0, %v1716
  %v1772 = vsub.f32 1.0, %v1746
  %1775 = vrot.lane.b32.xlu0 %v1769, 96
  %v1776 = vpop.permute.xlu0 %1775
  %1777 = vrot.lane.b32.xlu0 %v1770, 96
  %v1778 = vpop.permute.xlu0 %1777
  %v1781 = vmul.f32 %v1771, %v1776
  %v1782 = vmul.f32 %v1772, %v1778
  %v1783 = vrot.slane %v1511, 1
  %v1784 = vrot.slane %v1512, 1
  %v1787 = vmul.f32 %v1716, %v1783
  %v1788 = vmul.f32 %v1746, %v1784
  %v1789 = vadd.f32 %v1781, %v1787
  %v1790 = vadd.f32 %v1782, %v1788
  %v1793 = vrot.slane %v1629, 5
  %v1794 = vrot.slane %v1630, 4
  %v1795 = vsel %vm408, %v1794, %v1793
  %1796 = vrot.lane.b32.xlu0 %v1795, 96
  %v1797 = vpop.permute.xlu0 %1796
  %v1798 = vsel %vm139, %v1797, 0
  %1800 = vmatpush.msra.mxu0 0.0
  %1801 = vmatpush.msra.mxu0 0.0
  %1802 = vmatpush.msra.mxu0 0.0
  %1803 = vmatpush.msra.mxu0 0.0
  %1804 = vmatpush.msra.mxu0 0.0
  %1805 = vmatpush.msra.mxu0 0.0
  %1806 = vmatpush.msra.mxu0 0.0
  %1807 = vmatpush.msra.mxu0 0.0
  %1808 = vmatpush.msra.mxu0 0.0
  %1809 = vmatpush.msra.mxu0 0.0
  %1810 = vmatpush.msra.mxu0 0.0
  %1811 = vmatpush.msra.mxu0 0.0
  %1812 = vmatpush.msra.mxu0 %v132
  %1813 = vmatpush.msra.mxu0 %v131
  %1814 = vmatpush.msra.mxu0 %v130
  %1815 = vmatpush.msra.mxu0 %v129
  %1816 = vmatmul.f32.gmra.mxu0 %v1798
  %v1817 = vpop.f32.mrf.mxu0
  %v1818 = vadd.f32 0.0, %v1817
  %1819 = vdwg.mxu0
  %v1821 = vrot.slane %v1818, 2
  %v1822 = vrot.slane %v1818, 3
  %v1825 = vadd.f32 %v101, %v1821
  %v1826 = vadd.f32 %v104, %v1822
  %v1827 = vxor.u32 %v1825, 2147483648
  %v1828 = vxor.u32 %v1826, 2147483648
  %v1829 = vmul.f32 %v1827, 1.442695
  %v1830 = vpow.pop %v1829
  %v1831 = vmul.f32 %v1828, 1.442695
  %v1832 = vpow.pop %v1831
  %v1833 = vadd.f32 %v1830, 1.0
  %v1834 = vadd.f32 %v1832, 1.0
  %v1835 = vrcp.pop %v1833
  %v1836 = vmul.f32 %v1833, %v1835
  %v1837 = vsub.f32 1.0, %v1836
  %v1838 = vmul.f32 %v1835, %v1837
  %v1839 = vadd.f32 %v1835, %v1838
  %vm1840 = vweird.f32 %v1833
  %vm1841 = vweird.f32 %v1835
  %vm1842 = vmor %vm1840, %vm1841
  %v1843 = vsel %vm1842, %v1835, %v1839
  %v1844 = vand.u32 2147483647, %v1833
  %vm1845 = vcmp.eq.f32.partialorder %v1844, 8.507059e+37
  %v1846 = vand.u32 %v1833, 2147483648
  %v1847 = vor.u32 1.1754944e-38, %v1846
  %v1848 = vsel %vm1845, %v1847, %v1843
  %v1849 = vmul.f32 1.0, %v1848
  %v1850 = vrcp.pop %v1834
  %v1851 = vmul.f32 %v1834, %v1850
  %v1852 = vsub.f32 1.0, %v1851
  %v1853 = vmul.f32 %v1850, %v1852
  %v1854 = vadd.f32 %v1850, %v1853
  %vm1855 = vweird.f32 %v1834
  %vm1856 = vweird.f32 %v1850
  %vm1857 = vmor %vm1855, %vm1856
  %v1858 = vsel %vm1857, %v1850, %v1854
  %v1859 = vand.u32 2147483647, %v1834
  %vm1860 = vcmp.eq.f32.partialorder %v1859, 8.507059e+37
  %v1861 = vand.u32 %v1834, 2147483648
  %v1862 = vor.u32 1.1754944e-38, %v1861
  %v1863 = vsel %vm1860, %v1862, %v1858
  %v1864 = vmul.f32 1.0, %v1863
  %v1865 = vadd.f32 %v1818, %v210
  %v1867 = vrot.slane %v1865, 2
  %v1868 = vrot.slane %v1865, 3
  %1869 = vrot.lane.b32.xlu0 %v1867, 64
  %v1870 = vpop.permute.xlu0 %1869
  %1871 = vrot.lane.b32.xlu0 %v1868, 64
  %v1872 = vpop.permute.xlu0 %1871
  %v1875 = vmul.f32 %v1849, %v1870
  %v1876 = vmul.f32 %v1864, %v1872
  %1879 = vrot.lane.b32.xlu0 %v1875, 64
  %v1880 = vpop.permute.xlu0 %1879
  %1881 = vrot.lane.b32.xlu0 %v1876, 64
  %v1882 = vpop.permute.xlu0 %1881
  %v1885 = vadd.f32 %v101, %v1880
  %v1886 = vadd.f32 %v104, %v1882
  %v1887 = vtanh.pop %v1885
  %v1888 = vtanh.pop %v1886
  %v1889 = vsub.f32 1.0, %v1849
  %v1890 = vsub.f32 1.0, %v1864
  %1893 = vrot.lane.b32.xlu0 %v1887, 96
  %v1894 = vpop.permute.xlu0 %1893
  %1895 = vrot.lane.b32.xlu0 %v1888, 96
  %v1896 = vpop.permute.xlu0 %1895
  %v1899 = vmul.f32 %v1889, %v1894
  %v1900 = vmul.f32 %v1890, %v1896
  %v1901 = vrot.slane %v1629, 7
  %v1902 = vrot.slane %v1630, 7
  %v1905 = vmul.f32 %v1849, %v1901
  %v1906 = vmul.f32 %v1864, %v1902
  %v1907 = vadd.f32 %v1899, %v1905
  %v1908 = vadd.f32 %v1900, %v1906
  %v1911 = vrot.slane %v1789, 2
  %v1912 = vrot.slane %v1790, 1
  %v1913 = vsel %vm408, %v1912, %v1911
  %v1914 = vsel %vm139, %v1913, 0
  %1916 = vmatpush.msra.mxu0 0.0
  %1917 = vmatpush.msra.mxu0 0.0
  %1918 = vmatpush.msra.mxu0 0.0
  %1919 = vmatpush.msra.mxu0 0.0
  %1920 = vmatpush.msra.mxu0 0.0
  %1921 = vmatpush.msra.mxu0 0.0
  %1922 = vmatpush.msra.mxu0 0.0
  %1923 = vmatpush.msra.mxu0 0.0
  %1924 = vmatpush.msra.mxu0 0.0
  %1925 = vmatpush.msra.mxu0 0.0
  %1926 = vmatpush.msra.mxu0 0.0
  %1927 = vmatpush.msra.mxu0 0.0
  %1928 = vmatpush.msra.mxu0 %v136
  %1929 = vmatpush.msra.mxu0 %v135
  %1930 = vmatpush.msra.mxu0 %v134
  %1931 = vmatpush.msra.mxu0 %v133
  %1932 = vmatmul.f32.gmra.mxu0 %v1914
  %v1933 = vpop.f32.mrf.mxu0
  %v1934 = vadd.f32 0.0, %v1933
  %1935 = vdwg.mxu0
  %v1937 = vrot.slane %v1934, 7
  %1938 = vrot.lane.b32.xlu0 %v1937, 96
  %v1939 = vpop.permute.xlu0 %1938
  %1940 = vrot.lane.b32.xlu0 %v1934, 96
  %v1941 = vpop.permute.xlu0 %1940
  %v1944 = vadd.f32 %v101, %v1939
  %v1945 = vadd.f32 %v124, %v1939
  %v1946 = vadd.f32 %v104, %v1941
  %v1947 = vadd.f32 %v127, %v1941
  %v1948 = vxor.u32 %v1944, 2147483648
  %v1949 = vxor.u32 %v1945, 2147483648
  %v1950 = vxor.u32 %v1946, 2147483648
  %v1951 = vxor.u32 %v1947, 2147483648
  %v1952 = vmul.f32 %v1948, 1.442695
  %v1953 = vpow.pop %v1952
  %v1954 = vmul.f32 %v1949, 1.442695
  %v1955 = vpow.pop %v1954
  %v1956 = vmul.f32 %v1950, 1.442695
  %v1957 = vpow.pop %v1956
  %v1958 = vmul.f32 %v1951, 1.442695
  %v1959 = vpow.pop %v1958
  %v1960 = vadd.f32 %v1953, 1.0
  %v1961 = vadd.f32 %v1955, 1.0
  %v1962 = vadd.f32 %v1957, 1.0
  %v1963 = vadd.f32 %v1959, 1.0
  %v1964 = vrcp.pop %v1960
  %v1965 = vmul.f32 %v1960, %v1964
  %v1966 = vsub.f32 1.0, %v1965
  %v1967 = vmul.f32 %v1964, %v1966
  %v1968 = vadd.f32 %v1964, %v1967
  %vm1969 = vweird.f32 %v1960
  %vm1970 = vweird.f32 %v1964
  %vm1971 = vmor %vm1969, %vm1970
  %v1972 = vsel %vm1971, %v1964, %v1968
  %v1973 = vand.u32 2147483647, %v1960
  %vm1974 = vcmp.eq.f32.partialorder %v1973, 8.507059e+37
  %v1975 = vand.u32 %v1960, 2147483648
  %v1976 = vor.u32 1.1754944e-38, %v1975
  %v1977 = vsel %vm1974, %v1976, %v1972
  %v1978 = vmul.f32 1.0, %v1977
  %v1979 = vrcp.pop %v1961
  %v1980 = vmul.f32 %v1961, %v1979
  %v1981 = vsub.f32 1.0, %v1980
  %v1982 = vmul.f32 %v1979, %v1981
  %v1983 = vadd.f32 %v1979, %v1982
  %vm1984 = vweird.f32 %v1961
  %vm1985 = vweird.f32 %v1979
  %vm1986 = vmor %vm1984, %vm1985
  %v1987 = vsel %vm1986, %v1979, %v1983
  %v1988 = vand.u32 2147483647, %v1961
  %vm1989 = vcmp.eq.f32.partialorder %v1988, 8.507059e+37
  %v1990 = vand.u32 %v1961, 2147483648
  %v1991 = vor.u32 1.1754944e-38, %v1990
  %v1992 = vsel %vm1989, %v1991, %v1987
  %v1993 = vmul.f32 1.0, %v1992
  %v1994 = vrcp.pop %v1962
  %v1995 = vmul.f32 %v1962, %v1994
  %v1996 = vsub.f32 1.0, %v1995
  %v1997 = vmul.f32 %v1994, %v1996
  %v1998 = vadd.f32 %v1994, %v1997
  %vm1999 = vweird.f32 %v1962
  %vm2000 = vweird.f32 %v1994
  %vm2001 = vmor %vm1999, %vm2000
  %v2002 = vsel %vm2001, %v1994, %v1998
  %v2003 = vand.u32 2147483647, %v1962
  %vm2004 = vcmp.eq.f32.partialorder %v2003, 8.507059e+37
  %v2005 = vand.u32 %v1962, 2147483648
  %v2006 = vor.u32 1.1754944e-38, %v2005
  %v2007 = vsel %vm2004, %v2006, %v2002
  %v2008 = vmul.f32 1.0, %v2007
  %v2009 = vrcp.pop %v1963
  %v2010 = vmul.f32 %v1963, %v2009
  %v2011 = vsub.f32 1.0, %v2010
  %v2012 = vmul.f32 %v2009, %v2011
  %v2013 = vadd.f32 %v2009, %v2012
  %vm2014 = vweird.f32 %v1963
  %vm2015 = vweird.f32 %v2009
  %vm2016 = vmor %vm2014, %vm2015
  %v2017 = vsel %vm2016, %v2009, %v2013
  %v2018 = vand.u32 2147483647, %v1963
  %vm2019 = vcmp.eq.f32.partialorder %v2018, 8.507059e+37
  %v2020 = vand.u32 %v1963, 2147483648
  %v2021 = vor.u32 1.1754944e-38, %v2020
  %v2022 = vsel %vm2019, %v2021, %v2017
  %v2023 = vmul.f32 1.0, %v2022
  %v2024 = vadd.f32 %v1934, %v363
  %v2026 = vrot.slane %v2024, 7
  %2027 = vrot.lane.b32.xlu0 %v2026, 32
  %v2028 = vpop.permute.xlu0 %2027
  %2029 = vrot.lane.b32.xlu0 %v2024, 32
  %v2030 = vpop.permute.xlu0 %2029
  %v2033 = vmul.f32 %v1978, %v2028
  %v2034 = vmul.f32 %v2008, %v2030
  %2037 = vrot.lane.b32.xlu0 %v2033, 64
  %v2038 = vpop.permute.xlu0 %2037
  %2039 = vrot.lane.b32.xlu0 %v2034, 64
  %v2040 = vpop.permute.xlu0 %2039
  %v2043 = vadd.f32 %v124, %v2038
  %v2044 = vadd.f32 %v127, %v2040
  %v2045 = vtanh.pop %v2043
  %v2046 = vtanh.pop %v2044
  %v2047 = vsub.f32 1.0, %v1993
  %v2048 = vsub.f32 1.0, %v2023
  %2051 = vrot.lane.b32.xlu0 %v2045, 96
  %v2052 = vpop.permute.xlu0 %2051
  %2053 = vrot.lane.b32.xlu0 %v2046, 96
  %v2054 = vpop.permute.xlu0 %2053
  %v2057 = vmul.f32 %v2047, %v2052
  %v2058 = vmul.f32 %v2048, %v2054
  %v2059 = vrot.slane %v1789, 1
  %v2062 = vmul.f32 %v1993, %v2059
  %v2063 = vmul.f32 %v2023, %v1912
  %v2064 = vadd.f32 %v2057, %v2062
  %v2065 = vadd.f32 %v2058, %v2063
  %v2068 = vrot.slane %v1907, 6
  %v2069 = vrot.slane %v1908, 5
  %v2070 = vsel %vm408, %v2069, %v2068
  %2071 = vrot.lane.b32.xlu0 %v2070, 96
  %v2072 = vpop.permute.xlu0 %2071
  %v2073 = vsel %vm139, %v2072, 0
  %2075 = vmatpush.msra.mxu0 0.0
  %2076 = vmatpush.msra.mxu0 0.0
  %2077 = vmatpush.msra.mxu0 0.0
  %2078 = vmatpush.msra.mxu0 0.0
  %2079 = vmatpush.msra.mxu0 0.0
  %2080 = vmatpush.msra.mxu0 0.0
  %2081 = vmatpush.msra.mxu0 0.0
  %2082 = vmatpush.msra.mxu0 0.0
  %2083 = vmatpush.msra.mxu0 0.0
  %2084 = vmatpush.msra.mxu0 0.0
  %2085 = vmatpush.msra.mxu0 0.0
  %2086 = vmatpush.msra.mxu0 0.0
  %2087 = vmatpush.msra.mxu0 %v132
  %2088 = vmatpush.msra.mxu0 %v131
  %2089 = vmatpush.msra.mxu0 %v130
  %2090 = vmatpush.msra.mxu0 %v129
  %2091 = vmatmul.f32.gmra.mxu0 %v2073
  %v2092 = vpop.f32.mrf.mxu0
  %v2093 = vadd.f32 0.0, %v2092
  %2094 = vdwg.mxu0
  %v2096 = vrot.slane %v2093, 1
  %v2097 = vrot.slane %v2093, 2
  %v2100 = vadd.f32 %v101, %v2096
  %v2101 = vadd.f32 %v104, %v2097
  %v2102 = vxor.u32 %v2100, 2147483648
  %v2103 = vxor.u32 %v2101, 2147483648
  %v2104 = vmul.f32 %v2102, 1.442695
  %v2105 = vpow.pop %v2104
  %v2106 = vmul.f32 %v2103, 1.442695
  %v2107 = vpow.pop %v2106
  %v2108 = vadd.f32 %v2105, 1.0
  %v2109 = vadd.f32 %v2107, 1.0
  %v2110 = vrcp.pop %v2108
  %v2111 = vmul.f32 %v2108, %v2110
  %v2112 = vsub.f32 1.0, %v2111
  %v2113 = vmul.f32 %v2110, %v2112
  %v2114 = vadd.f32 %v2110, %v2113
  %vm2115 = vweird.f32 %v2108
  %vm2116 = vweird.f32 %v2110
  %vm2117 = vmor %vm2115, %vm2116
  %v2118 = vsel %vm2117, %v2110, %v2114
  %v2119 = vand.u32 2147483647, %v2108
  %vm2120 = vcmp.eq.f32.partialorder %v2119, 8.507059e+37
  %v2121 = vand.u32 %v2108, 2147483648
  %v2122 = vor.u32 1.1754944e-38, %v2121
  %v2123 = vsel %vm2120, %v2122, %v2118
  %v2124 = vmul.f32 1.0, %v2123
  %v2125 = vrcp.pop %v2109
  %v2126 = vmul.f32 %v2109, %v2125
  %v2127 = vsub.f32 1.0, %v2126
  %v2128 = vmul.f32 %v2125, %v2127
  %v2129 = vadd.f32 %v2125, %v2128
  %vm2130 = vweird.f32 %v2109
  %vm2131 = vweird.f32 %v2125
  %vm2132 = vmor %vm2130, %vm2131
  %v2133 = vsel %vm2132, %v2125, %v2129
  %v2134 = vand.u32 2147483647, %v2109
  %vm2135 = vcmp.eq.f32.partialorder %v2134, 8.507059e+37
  %v2136 = vand.u32 %v2109, 2147483648
  %v2137 = vor.u32 1.1754944e-38, %v2136
  %v2138 = vsel %vm2135, %v2137, %v2133
  %v2139 = vmul.f32 1.0, %v2138
  %v2140 = vadd.f32 %v2093, %v210
  %v2142 = vrot.slane %v2140, 1
  %v2143 = vrot.slane %v2140, 2
  %2144 = vrot.lane.b32.xlu0 %v2142, 64
  %v2145 = vpop.permute.xlu0 %2144
  %2146 = vrot.lane.b32.xlu0 %v2143, 64
  %v2147 = vpop.permute.xlu0 %2146
  %v2150 = vmul.f32 %v2124, %v2145
  %v2151 = vmul.f32 %v2139, %v2147
  %2154 = vrot.lane.b32.xlu0 %v2150, 64
  %v2155 = vpop.permute.xlu0 %2154
  %2156 = vrot.lane.b32.xlu0 %v2151, 64
  %v2157 = vpop.permute.xlu0 %2156
  %v2160 = vadd.f32 %v101, %v2155
  %v2161 = vadd.f32 %v104, %v2157
  %v2162 = vtanh.pop %v2160
  %v2163 = vtanh.pop %v2161
  %v2164 = vsub.f32 1.0, %v2124
  %v2165 = vsub.f32 1.0, %v2139
  %2168 = vrot.lane.b32.xlu0 %v2162, 96
  %v2169 = vpop.permute.xlu0 %2168
  %2170 = vrot.lane.b32.xlu0 %v2163, 96
  %v2171 = vpop.permute.xlu0 %2170
  %v2174 = vmul.f32 %v2164, %v2169
  %v2175 = vmul.f32 %v2165, %v2171
  %v2176 = vrot.slane %v1907, 7
  %v2177 = vrot.slane %v1908, 7
  %v2180 = vmul.f32 %v2124, %v2176
  %v2181 = vmul.f32 %v2139, %v2177
  %v2182 = vadd.f32 %v2174, %v2180
  %v2183 = vadd.f32 %v2175, %v2181
  %v2186 = vrot.slane %v2064, 1
  %v2187 = vsel %vm408, %v2065, %v2186
  %v2188 = vsel %vm139, %v2187, 0
  %2190 = vmatpush.msra.mxu0 0.0
  %2191 = vmatpush.msra.mxu0 0.0
  %2192 = vmatpush.msra.mxu0 0.0
  %2193 = vmatpush.msra.mxu0 0.0
  %2194 = vmatpush.msra.mxu0 0.0
  %2195 = vmatpush.msra.mxu0 0.0
  %2196 = vmatpush.msra.mxu0 0.0
  %2197 = vmatpush.msra.mxu0 0.0
  %2198 = vmatpush.msra.mxu0 0.0
  %2199 = vmatpush.msra.mxu0 0.0
  %2200 = vmatpush.msra.mxu0 0.0
  %2201 = vmatpush.msra.mxu0 0.0
  %2202 = vmatpush.msra.mxu0 %v136
  %2203 = vmatpush.msra.mxu0 %v135
  %2204 = vmatpush.msra.mxu0 %v134
  %2205 = vmatpush.msra.mxu0 %v133
  %2206 = vmatmul.f32.gmra.mxu0 %v2188
  %v2207 = vpop.f32.mrf.mxu0
  %v2208 = vadd.f32 0.0, %v2207
  %2209 = vdwg.mxu0
  %v2211 = vrot.slane %v2208, 1
  %2212 = vrot.lane.b32.xlu0 %v2208, 96
  %v2213 = vpop.permute.xlu0 %2212
  %2214 = vrot.lane.b32.xlu0 %v2211, 96
  %v2215 = vpop.permute.xlu0 %2214
  %v2218 = vadd.f32 %v101, %v2213
  %v2219 = vadd.f32 %v124, %v2213
  %v2220 = vadd.f32 %v104, %v2215
  %v2221 = vadd.f32 %v127, %v2215
  %v2222 = vxor.u32 %v2218, 2147483648
  %v2223 = vxor.u32 %v2219, 2147483648
  %v2224 = vxor.u32 %v2220, 2147483648
  %v2225 = vxor.u32 %v2221, 2147483648
  %v2226 = vmul.f32 %v2222, 1.442695
  %v2227 = vpow.pop %v2226
  %v2228 = vmul.f32 %v2223, 1.442695
  %v2229 = vpow.pop %v2228
  %v2230 = vmul.f32 %v2224, 1.442695
  %v2231 = vpow.pop %v2230
  %v2232 = vmul.f32 %v2225, 1.442695
  %v2233 = vpow.pop %v2232
  %v2234 = vadd.f32 %v2227, 1.0
  %v2235 = vadd.f32 %v2229, 1.0
  %v2236 = vadd.f32 %v2231, 1.0
  %v2237 = vadd.f32 %v2233, 1.0
  %v2238 = vrcp.pop %v2234
  %v2239 = vmul.f32 %v2234, %v2238
  %v2240 = vsub.f32 1.0, %v2239
  %v2241 = vmul.f32 %v2238, %v2240
  %v2242 = vadd.f32 %v2238, %v2241
  %vm2243 = vweird.f32 %v2234
  %vm2244 = vweird.f32 %v2238
  %vm2245 = vmor %vm2243, %vm2244
  %v2246 = vsel %vm2245, %v2238, %v2242
  %v2247 = vand.u32 2147483647, %v2234
  %vm2248 = vcmp.eq.f32.partialorder %v2247, 8.507059e+37
  %v2249 = vand.u32 %v2234, 2147483648
  %v2250 = vor.u32 1.1754944e-38, %v2249
  %v2251 = vsel %vm2248, %v2250, %v2246
  %v2252 = vmul.f32 1.0, %v2251
  %v2253 = vrcp.pop %v2235
  %v2254 = vmul.f32 %v2235, %v2253
  %v2255 = vsub.f32 1.0, %v2254
  %v2256 = vmul.f32 %v2253, %v2255
  %v2257 = vadd.f32 %v2253, %v2256
  %vm2258 = vweird.f32 %v2235
  %vm2259 = vweird.f32 %v2253
  %vm2260 = vmor %vm2258, %vm2259
  %v2261 = vsel %vm2260, %v2253, %v2257
  %v2262 = vand.u32 2147483647, %v2235
  %vm2263 = vcmp.eq.f32.partialorder %v2262, 8.507059e+37
  %v2264 = vand.u32 %v2235, 2147483648
  %v2265 = vor.u32 1.1754944e-38, %v2264
  %v2266 = vsel %vm2263, %v2265, %v2261
  %v2267 = vmul.f32 1.0, %v2266
  %v2268 = vrcp.pop %v2236
  %v2269 = vmul.f32 %v2236, %v2268
  %v2270 = vsub.f32 1.0, %v2269
  %v2271 = vmul.f32 %v2268, %v2270
  %v2272 = vadd.f32 %v2268, %v2271
  %vm2273 = vweird.f32 %v2236
  %vm2274 = vweird.f32 %v2268
  %vm2275 = vmor %vm2273, %vm2274
  %v2276 = vsel %vm2275, %v2268, %v2272
  %v2277 = vand.u32 2147483647, %v2236
  %vm2278 = vcmp.eq.f32.partialorder %v2277, 8.507059e+37
  %v2279 = vand.u32 %v2236, 2147483648
  %v2280 = vor.u32 1.1754944e-38, %v2279
  %v2281 = vsel %vm2278, %v2280, %v2276
  %v2282 = vmul.f32 1.0, %v2281
  %v2283 = vrcp.pop %v2237
  %v2284 = vmul.f32 %v2237, %v2283
  %v2285 = vsub.f32 1.0, %v2284
  %v2286 = vmul.f32 %v2283, %v2285
  %v2287 = vadd.f32 %v2283, %v2286
  %vm2288 = vweird.f32 %v2237
  %vm2289 = vweird.f32 %v2283
  %vm2290 = vmor %vm2288, %vm2289
  %v2291 = vsel %vm2290, %v2283, %v2287
  %v2292 = vand.u32 2147483647, %v2237
  %vm2293 = vcmp.eq.f32.partialorder %v2292, 8.507059e+37
  %v2294 = vand.u32 %v2237, 2147483648
  %v2295 = vor.u32 1.1754944e-38, %v2294
  %v2296 = vsel %vm2293, %v2295, %v2291
  %v2297 = vmul.f32 1.0, %v2296
  %v2298 = vadd.f32 %v2208, %v363
  %v2300 = vrot.slane %v2298, 1
  %2301 = vrot.lane.b32.xlu0 %v2298, 32
  %v2302 = vpop.permute.xlu0 %2301
  %2303 = vrot.lane.b32.xlu0 %v2300, 32
  %v2304 = vpop.permute.xlu0 %2303
  %v2307 = vmul.f32 %v2252, %v2302
  %v2308 = vmul.f32 %v2282, %v2304
  %2311 = vrot.lane.b32.xlu0 %v2307, 64
  %v2312 = vpop.permute.xlu0 %2311
  %2313 = vrot.lane.b32.xlu0 %v2308, 64
  %v2314 = vpop.permute.xlu0 %2313
  %v2317 = vadd.f32 %v124, %v2312
  %v2318 = vadd.f32 %v127, %v2314
  %v2319 = vtanh.pop %v2317
  %v2320 = vtanh.pop %v2318
  %v2321 = vsub.f32 1.0, %v2267
  %v2322 = vsub.f32 1.0, %v2297
  %2325 = vrot.lane.b32.xlu0 %v2319, 96
  %v2326 = vpop.permute.xlu0 %2325
  %2327 = vrot.lane.b32.xlu0 %v2320, 96
  %v2328 = vpop.permute.xlu0 %2327
  %v2331 = vmul.f32 %v2321, %v2326
  %v2332 = vmul.f32 %v2322, %v2328
  %v2333 = vrot.slane %v2065, 1
  %v2336 = vmul.f32 %v2267, %v2186
  %v2337 = vmul.f32 %v2297, %v2333
  %v2338 = vadd.f32 %v2331, %v2336
  %v2339 = vadd.f32 %v2332, %v2337
  %v2340 = vmax.f32 %v2182, 0.0
  %v2341 = vmax.f32 %v2183, 0.0
  %v2342 = vmax.f32 %v2338, 0.0
  %v2343 = vmax.f32 %v2339, 0.0
  %v2344 = vld [vmem:[%s1] sm:$0x3]
  %v2345 = vld [vmem:[%s12] sm:$0x1]
  %vm2346 = vcmp.ge.f32.partialorder %v2344, 0.0
  %v2348 = vperm.slane %v2345, 0
  %v2350 = vmul.f32 %v2348, %v2344
  %v2351 = vsel %vm2346, %v2344, %v2350
  %v2352 = vld [vmem:[%s8] sm:$0xff]
  %v2353 = vld [vmem:[%s8 + $0x8] sm:$0xff]
  %v2354 = vld [vmem:[%s8 + $0x10] sm:$0xff]
  %v2355 = vld [vmem:[%s8 + $0x18] sm:$0xff]
  %v2356 = vld [vmem:[%s9] sm:$0xff]
  %v2357 = vld [vmem:[%s9 + $0x8] sm:$0xff]
  %v2358 = vld [vmem:[%s9 + $0x10] sm:$0xff]
  %v2359 = vld [vmem:[%s9 + $0x18] sm:$0xff]
  %v2362 = vrot.slane %v2343, 7
  %v2363 = vsel %vm408, %v2362, %v2342
  %v2364 = vsel %vm139, %v2363, 0
  %2366 = vmatpush.msra.mxu0 0.0
  %2367 = vmatpush.msra.mxu0 0.0
  %2368 = vmatpush.msra.mxu0 0.0
  %2369 = vmatpush.msra.mxu0 0.0
  %2370 = vmatpush.msra.mxu0 0.0
  %2371 = vmatpush.msra.mxu0 0.0
  %2372 = vmatpush.msra.mxu0 0.0
  %2373 = vmatpush.msra.mxu0 0.0
  %2374 = vmatpush.msra.mxu0 0.0
  %2375 = vmatpush.msra.mxu0 0.0
  %2376 = vmatpush.msra.mxu0 0.0
  %2377 = vmatpush.msra.mxu0 0.0
  %2378 = vmatpush.msra.mxu0 %v2359
  %2379 = vmatpush.msra.mxu0 %v2358
  %2380 = vmatpush.msra.mxu0 %v2357
  %2381 = vmatpush.msra.mxu0 %v2356
  %2382 = vmatmul.f32.gmra.mxu0 %v2364
  %v2383 = vpop.f32.mrf.mxu0
  %v2384 = vadd.f32 0.0, %v2383
  %2385 = vdwg.mxu0
  %v2388 = vrot.slane %v2340, 7
  %v2389 = vrot.slane %v2341, 6
  %v2390 = vsel %vm408, %v2389, %v2388
  %2391 = vrot.lane.b32.xlu0 %v2390, 96
  %v2392 = vpop.permute.xlu0 %2391
  %v2393 = vsel %vm139, %v2392, 0
  %2395 = vmatpush.msra.mxu0 0.0
  %2396 = vmatpush.msra.mxu0 0.0
  %2397 = vmatpush.msra.mxu0 0.0
  %2398 = vmatpush.msra.mxu0 0.0
  %2399 = vmatpush.msra.mxu0 0.0
  %2400 = vmatpush.msra.mxu0 0.0
  %2401 = vmatpush.msra.mxu0 0.0
  %2402 = vmatpush.msra.mxu0 0.0
  %2403 = vmatpush.msra.mxu0 0.0
  %2404 = vmatpush.msra.mxu0 0.0
  %2405 = vmatpush.msra.mxu0 0.0
  %2406 = vmatpush.msra.mxu0 0.0
  %2407 = vmatpush.msra.mxu0 %v2355
  %2408 = vmatpush.msra.mxu0 %v2354
  %2409 = vmatpush.msra.mxu0 %v2353
  %2410 = vmatpush.msra.mxu0 %v2352
  %2411 = vmatmul.f32.gmra.mxu0 %v2393
  %v2412 = vpop.f32.mrf.mxu0
  %v2413 = vadd.f32 %v2384, %v2412
  %2414 = vdwg.mxu0
  %v2415 = vld [vmem:[%s10] sm:$0xff]
  %vm2416 = vcmask 64512
  %v2418 = vsel %vm2416, %v2351, 0
  %2420 = vmatpush.msra.mxu0 0.0
  %2421 = vmatpush.msra.mxu0 0.0
  %2422 = vmatpush.msra.mxu0 0.0
  %2423 = vmatpush.msra.mxu0 0.0
  %2424 = vmatpush.msra.mxu0 0.0
  %2425 = vmatpush.msra.mxu0 0.0
  %2426 = vmatpush.msra.mxu0 0.0
  %2427 = vmatpush.msra.mxu0 0.0
  %2428 = vmatpush.msra.mxu0 0.0
  %2429 = vmatpush.msra.mxu0 0.0
  %2430 = vmatpush.msra.mxu0 0.0
  %2431 = vmatpush.msra.mxu0 0.0
  %2432 = vmatpush.msra.mxu0 0.0
  %2433 = vmatpush.msra.mxu0 0.0
  %2434 = vmatpush.msra.mxu0 0.0
  %2435 = vmatpush.msra.mxu0 %v2415
  %2436 = vmatmul.f32.gmra.mxu0 %v2418
  %v2437 = vpop.f32.mrf.mxu0
  %v2438 = vadd.f32 0.0, %v2437
  %2439 = vdwg.mxu0
  %v2440 = vadd.f32 %v2413, %v2438
  %v2441 = vld [vmem:[%s11] sm:$0x1]
  %v2443 = vperm.slane %v2441, 0
  %v2445 = vadd.f32 %v2440, %v2443
  %v2446 = vld [vmem:[%s13] sm:$0x1]
  %vm2447 = vcmp.ge.f32.partialorder %v2445, 0.0
  %v2449 = vperm.slane %v2446, 0
  %v2451 = vmul.f32 %v2449, %v2445
  %v2452 = vsel %vm2447, %v2445, %v2451
  %v2453 = vld [vmem:[%s14] sm:$0xff]
  %v2454 = vld [vmem:[%s14 + $0x8] sm:$0xff]
  %v2455 = vld [vmem:[%s14 + $0x10] sm:$0xff]
  %v2456 = vld [vmem:[%s14 + $0x18] sm:$0xff]
  %v2457 = vld [vmem:[%s14 + $0x20] sm:$0xff]
  %v2458 = vld [vmem:[%s14 + $0x28] sm:$0xff]
  %v2459 = vld [vmem:[%s14 + $0x30] sm:$0xff]
  %v2460 = vld [vmem:[%s14 + $0x38] sm:$0xff]
  %v2461 = vld [vmem:[%s15] sm:$0x1]
  %v2463 = vperm.slane %v2461, 0
  %vm2465 = vcmask 523264
  %v2467 = vsel %vm2465, %v2452, 0
  %2469 = vmatpush.msra.mxu0 0.0
  %2470 = vmatpush.msra.mxu0 0.0
  %2471 = vmatpush.msra.mxu0 0.0
  %2472 = vmatpush.msra.mxu0 0.0
  %2473 = vmatpush.msra.mxu0 0.0
  %2474 = vmatpush.msra.mxu0 0.0
  %2475 = vmatpush.msra.mxu0 0.0
  %2476 = vmatpush.msra.mxu0 0.0
  %2477 = vmatpush.msra.mxu0 %v2460
  %2478 = vmatpush.msra.mxu0 %v2459
  %2479 = vmatpush.msra.mxu0 %v2458
  %2480 = vmatpush.msra.mxu0 %v2457
  %2481 = vmatpush.msra.mxu0 %v2456
  %2482 = vmatpush.msra.mxu0 %v2455
  %2483 = vmatpush.msra.mxu0 %v2454
  %2484 = vmatpush.msra.mxu0 %v2453
  %2485 = vmatmul.f32.gmra.mxu0 %v2467
  %v2486 = vpop.f32.mrf.mxu0
  %v2487 = vadd.f32 %v2463, %v2486
  %2488 = vdwg.mxu0
  %v2489 = vld [vmem:[%s16] sm:$0x1]
  %vm2490 = vcmp.ge.f32.partialorder %v2487, 0.0
  %v2492 = vperm.slane %v2489, 0
  %v2494 = vmul.f32 %v2492, %v2487
  %v2495 = vsel %vm2490, %v2487, %v2494
  %v2496 = vld [vmem:[%s17] sm:$0xff]
  %v2497 = vld [vmem:[%s17 + $0x8] sm:$0xff]
  %v2498 = vld [vmem:[%s17 + $0x10] sm:$0xff]
  %v2499 = vld [vmem:[%s17 + $0x18] sm:$0xff]
  %v2500 = vld [vmem:[#allocation2] sm:$0x1]
  %v2502 = vperm.slane %v2500, 0
  %v2505 = vsel %vm139, %v2495, 0
  %2507 = vmatpush.msra.mxu0 0.0
  %2508 = vmatpush.msra.mxu0 0.0
  %2509 = vmatpush.msra.mxu0 0.0
  %2510 = vmatpush.msra.mxu0 0.0
  %2511 = vmatpush.msra.mxu0 0.0
  %2512 = vmatpush.msra.mxu0 0.0
  %2513 = vmatpush.msra.mxu0 0.0
  %2514 = vmatpush.msra.mxu0 0.0
  %2515 = vmatpush.msra.mxu0 0.0
  %2516 = vmatpush.msra.mxu0 0.0
  %2517 = vmatpush.msra.mxu0 0.0
  %2518 = vmatpush.msra.mxu0 0.0
  %2519 = vmatpush.msra.mxu0 %v2499
  %2520 = vmatpush.msra.mxu0 %v2498
  %2521 = vmatpush.msra.mxu0 %v2497
  %2522 = vmatpush.msra.mxu0 %v2496
  %2523 = vmatmul.f32.gmra.mxu0 %v2505
  %v2524 = vpop.f32.mrf.mxu0
  %v2525 = vadd.f32 %v2502, %v2524
  %2526 = vdwg.mxu0
  %v2527 = vmax.f32 %v2525, 0.0
  %vm2528 = vcmask 1024
  %2529 = vst.msk [vmem:[%s19] sm:$0x3] %vm2528, %v2527
  // Predicated region
  $region78: #{rnn_forward.1} parent=0 // pred_check
    _
  $region79: #{rnn_forward.1} parent=0 // pred_check_branch
    %2531 = sbr.rel (0) target = $region81
  $region80: #{rnn_forward.1} parent=0 // pred_region
    _
  $region81: #{rnn_forward.1} parent=0 // pred_fallthru
    _
  // Predicated region
  $region82: #{rnn_forward.1} parent=0 // pred_check
    _
  $region83: #{rnn_forward.1} parent=0 // pred_check_branch
    %2533 = sbr.rel (0) target = $region85
  $region84: #{rnn_forward.1} parent=0 // pred_region
    _
  $region85: #{rnn_forward.1} parent=0 // pred_fallthru
    _

</llo_original>
